<compile_context>
chip_gen: v5e
topology: v5e:2x2
jax: 0.10.0
libtpu: 0.0.40
codegen_flags: <defaults>
</compile_context>

<pallas_src>
import jax
import jax.numpy as jnp
from jax.experimental import pallas as pl
from jax.experimental.pallas import tpu as pltpu

IN_FEATURES = 28 * 28          # 784
K_PAD = 896                    # 7 * 128 (zero-padded contraction dim of layer 1)
H1 = 512
H2 = 512
OUT_FEATURES = 10
OUT_PAD = 128                  # lane-dense output slab; slice [:, :10] in wrapper


def _round_up(n, m):
    return (n + m - 1) // m * m


def mlp_kernel(x_ref, w1_ref, b1_ref, w2_ref, b2_ref, w3_ref, b3_ref, o_ref):
    # One batch tile per grid step.  Weight BlockSpecs have constant index_maps,
    # so their blocks are fetched once and stay resident across the whole grid.
    x = x_ref[...]  # (TB, K_PAD) bf16

    # Linear(784->512) + ReLU.  bf16 MXU inputs, f32 accumulate / bias / ReLU.
    h1 = jnp.dot(x, w1_ref[...], preferred_element_type=jnp.float32) + b1_ref[...]
    h1 = jnp.maximum(h1, 0.0)

    # Linear(512->512) + ReLU.
    h2 = jnp.dot(h1.astype(jnp.bfloat16), w2_ref[...],
                 preferred_element_type=jnp.float32) + b2_ref[...]
    h2 = jnp.maximum(h2, 0.0)

    # Linear(512->10), padded to 128 output lanes (pad columns exactly zero).
    logits = jnp.dot(h2.astype(jnp.bfloat16), w3_ref[...],
                     preferred_element_type=jnp.float32) + b3_ref[...]
    o_ref[...] = logits  # (TB, OUT_PAD) f32, unmasked lane-dense store


@jax.jit
def neural_network_forward(x_nchw, params):
    """Forward pass of NeuralNetwork: Flatten -> (Linear 784->512, ReLU,
    Linear 512->512, ReLU, Linear 512->10)."""
    w1, b1, w2, b2, w3, b3 = params
    B = x_nchw.shape[0]

    # nn.Flatten(): flatten all dims except batch (glue, stays in plain JAX).
    x = x_nchw.reshape(B, -1).astype(jnp.float32)
    assert x.shape[1] == IN_FEATURES

    # Pad K 784 -> 896 (zeros; exact) and cast the matmul operand to bf16.
    x = jnp.pad(x, ((0, 0), (0, K_PAD - IN_FEATURES))).astype(jnp.bfloat16)

    # Batch tile: multiples of 256 feed the MXU well; for tiny batches just round
    # B up to the sublane multiple (8) and use a single tile.
    TB = min(256, _round_up(B, 8))
    B_pad = _round_up(B, TB)
    if B_pad != B:
        x = jnp.pad(x, ((0, B_pad - B), (0, 0)))
    n_tiles = B_pad // TB

    # Prepare weights: bf16, (in, out) layout, zero-padded dims; biases f32.
    w1p = jnp.pad(w1, ((0, K_PAD - IN_FEATURES), (0, 0))).astype(jnp.bfloat16)
    w2p = w2.astype(jnp.bfloat16)
    w3p = jnp.pad(w3, ((0, 0), (0, OUT_PAD - OUT_FEATURES))).astype(jnp.bfloat16)
    b1p = b1.astype(jnp.float32)                                   # (1, 512)
    b2p = b2.astype(jnp.float32)                                   # (1, 512)
    b3p = jnp.pad(b3, ((0, 0), (0, OUT_PAD - OUT_FEATURES))).astype(jnp.float32)

    flops = 2 * B_pad * (K_PAD * H1 + H1 * H2 + H2 * OUT_PAD)
    bytes_accessed = (
        B_pad * K_PAD * 2                                   # x (bf16)
        + (K_PAD * H1 + H1 * H2 + H2 * OUT_PAD) * 2         # weights (bf16)
        + (H1 + H2 + OUT_PAD) * 4                           # biases (f32)
        + B_pad * OUT_PAD * 4                               # out (f32)
    )

    const = lambda shape: pl.BlockSpec(shape, lambda i: tuple(0 for _ in shape))

    out = pl.pallas_call(
        mlp_kernel,
        out_shape=jax.ShapeDtypeStruct((B_pad, OUT_PAD), jnp.float32),
        grid=(n_tiles,),
        in_specs=[
            pl.BlockSpec((TB, K_PAD), lambda i: (i, 0)),   # x: tiled over batch
            const((K_PAD, H1)),                            # W1 (resident)
            const((1, H1)),                                # b1
            const((H1, H2)),                               # W2 (resident)
            const((1, H2)),                                # b2
            const((H2, OUT_PAD)),                          # W3 (resident)
            const((1, OUT_PAD)),                           # b3
        ],
        out_specs=pl.BlockSpec((TB, OUT_PAD), lambda i: (i, 0)),
        compiler_params=pltpu.CompilerParams(
            dimension_semantics=("parallel",),
            vmem_limit_bytes=16 << 20,
        ),
        cost_estimate=pl.CostEstimate(
            flops=flops, transcendentals=0, bytes_accessed=bytes_accessed),
    )(x, w1p, b1p, w2p, b2p, w3p, b3p)

    return out[:B, :OUT_FEATURES]


def init_params(key):
    """Deterministic init mimicking PyTorch nn.Linear default (U[-1/sqrt(fan_in), ...]).
    Weights are stored transposed relative to PyTorch: (in_features, out_features)."""
    k1, k2, k3, k4, k5, k6 = jax.random.split(key, 6)

    def lin(kw, kb, fan_in, fan_out):
        bound = 1.0 / jnp.sqrt(fan_in)
        w = jax.random.uniform(kw, (fan_in, fan_out), jnp.float32, -bound, bound)
        b = jax.random.uniform(kb, (1, fan_out), jnp.float32, -bound, bound)
        return w, b

    w1, b1 = lin(k1, k2, IN_FEATURES, H1)
    w2, b2 = lin(k3, k4, H1, H2)
    w3, b3 = lin(k5, k6, H2, OUT_FEATURES)
    return (w1, b1, w2, b2, w3, b3)


def reference_forward(x_nchw, params):
    w1, b1, w2, b2, w3, b3 = params
    x = x_nchw.reshape(x_nchw.shape[0], -1).astype(jnp.float32)
    h1 = jnp.maximum(x @ w1 + b1, 0.0)
    h2 = jnp.maximum(h1 @ w2 + b2, 0.0)
    return h2 @ w3 + b3


if __name__ == "__main__":
    key = jax.random.PRNGKey(0)
    k_params, k_x = jax.random.split(key)

    params = init_params(k_params)
    # Small batch of MNIST-like images, NCHW as PyTorch would provide.
    x = jax.random.normal(k_x, (8, 1, 28, 28), dtype=jnp.float32)

    logits = neural_network_forward(x, params)
    logits = jax.block_until_ready(logits)

    ref = reference_forward(x, params)
    assert logits.shape == (8, 10)
    # bf16 matmul operands (f32 accumulate) => looser tolerance than pure f32.
    assert jnp.allclose(logits, ref, atol=2e-2, rtol=2e-2), (
        float(jnp.max(jnp.abs(logits - ref))))

    print("KERNEL_OK")
</pallas_src>

<mosaic_0001>
module attributes {stable_mosaic.version = 11 : i64} {
  func.func @mlp_kernel(%arg0: i32, %arg1: memref<8x896xbf16, #tpu.memory_space<vmem>>, %arg2: memref<896x512xbf16, #tpu.memory_space<vmem>>, %arg3: memref<1x512xf32, #tpu.memory_space<vmem>>, %arg4: memref<512x512xbf16, #tpu.memory_space<vmem>>, %arg5: memref<1x512xf32, #tpu.memory_space<vmem>>, %arg6: memref<512x128xbf16, #tpu.memory_space<vmem>>, %arg7: memref<1x128xf32, #tpu.memory_space<vmem>>, %arg8: memref<8x128xf32, #tpu.memory_space<vmem>>) attributes {dimension_semantics = [#tpu.dimension_semantics<parallel>], iteration_bounds = array<i64: 1>, scalar_prefetch = 0 : i64, scratch_operands = 0 : i64, tpu.core_type = #tpu.core_type<tc>, window_params = [{transform_indices = @transform_0, window_bounds = array<i64: 8, 896>}, {pipeline_mode = #tpu.pipeline_mode<synchronous>, transform_indices = @transform_1, window_bounds = array<i64: 896, 512>}, {pipeline_mode = #tpu.pipeline_mode<synchronous>, transform_indices = @transform_2, window_bounds = array<i64: 1, 512>}, {pipeline_mode = #tpu.pipeline_mode<synchronous>, transform_indices = @transform_3, window_bounds = array<i64: 512, 512>}, {pipeline_mode = #tpu.pipeline_mode<synchronous>, transform_indices = @transform_4, window_bounds = array<i64: 1, 512>}, {pipeline_mode = #tpu.pipeline_mode<synchronous>, transform_indices = @transform_5, window_bounds = array<i64: 512, 128>}, {pipeline_mode = #tpu.pipeline_mode<synchronous>, transform_indices = @transform_6, window_bounds = array<i64: 1, 128>}, {transform_indices = @transform_7, window_bounds = array<i64: 8, 128>}]} {
    %c0 = arith.constant 0 : index
    %c0_0 = arith.constant 0 : index
    %0 = vector.load %arg1[%c0, %c0_0] : memref<8x896xbf16, #tpu.memory_space<vmem>>, vector<8x896xbf16>
    %c0_1 = arith.constant 0 : index
    %c0_2 = arith.constant 0 : index
    %1 = vector.load %arg2[%c0_1, %c0_2] : memref<896x512xbf16, #tpu.memory_space<vmem>>, vector<896x512xbf16>
    %cst = arith.constant dense<0.000000e+00> : vector<8x512xf32>
    %2 = tpu.matmul %0, %1, %cst {dimension_numbers = #tpu.dot_dimension_numbers<[1], [0], [0], [1], [0, 0, 1, 1], [], []>} : vector<8x896xbf16>, vector<896x512xbf16>, vector<8x512xf32> -> vector<8x512xf32>
    %c0_3 = arith.constant 0 : index
    %c0_4 = arith.constant 0 : index
    %3 = vector.load %arg3[%c0_3, %c0_4] : memref<1x512xf32, #tpu.memory_space<vmem>>, vector<1x512xf32>
    %4 = vector.broadcast %3 : vector<1x512xf32> to vector<8x512xf32>
    %5 = arith.addf %2, %4 : vector<8x512xf32>
    %cst_5 = arith.constant 0.000000e+00 : f32
    %6 = vector.broadcast %cst_5 : f32 to vector<8x512xf32>
    %7 = arith.maximumf %5, %6 : vector<8x512xf32>
    %8 = arith.truncf %7 : vector<8x512xf32> to vector<8x512xbf16>
    %c0_6 = arith.constant 0 : index
    %c0_7 = arith.constant 0 : index
    %9 = vector.load %arg4[%c0_6, %c0_7] : memref<512x512xbf16, #tpu.memory_space<vmem>>, vector<512x512xbf16>
    %cst_8 = arith.constant dense<0.000000e+00> : vector<8x512xf32>
    %10 = tpu.matmul %8, %9, %cst_8 {dimension_numbers = #tpu.dot_dimension_numbers<[1], [0], [0], [1], [0, 0, 1, 1], [], []>} : vector<8x512xbf16>, vector<512x512xbf16>, vector<8x512xf32> -> vector<8x512xf32>
    %c0_9 = arith.constant 0 : index
    %c0_10 = arith.constant 0 : index
    %11 = vector.load %arg5[%c0_9, %c0_10] : memref<1x512xf32, #tpu.memory_space<vmem>>, vector<1x512xf32>
    %12 = vector.broadcast %11 : vector<1x512xf32> to vector<8x512xf32>
    %13 = arith.addf %10, %12 : vector<8x512xf32>
    %cst_11 = arith.constant 0.000000e+00 : f32
    %14 = vector.broadcast %cst_11 : f32 to vector<8x512xf32>
    %15 = arith.maximumf %13, %14 : vector<8x512xf32>
    %16 = arith.truncf %15 : vector<8x512xf32> to vector<8x512xbf16>
    %c0_12 = arith.constant 0 : index
    %c0_13 = arith.constant 0 : index
    %17 = vector.load %arg6[%c0_12, %c0_13] : memref<512x128xbf16, #tpu.memory_space<vmem>>, vector<512x128xbf16>
    %cst_14 = arith.constant dense<0.000000e+00> : vector<8x128xf32>
    %18 = tpu.matmul %16, %17, %cst_14 {dimension_numbers = #tpu.dot_dimension_numbers<[1], [0], [0], [1], [0, 0, 1, 1], [], []>} : vector<8x512xbf16>, vector<512x128xbf16>, vector<8x128xf32> -> vector<8x128xf32>
    %c0_15 = arith.constant 0 : index
    %c0_16 = arith.constant 0 : index
    %19 = vector.load %arg7[%c0_15, %c0_16] : memref<1x128xf32, #tpu.memory_space<vmem>>, vector<1x128xf32>
    %20 = vector.broadcast %19 : vector<1x128xf32> to vector<8x128xf32>
    %21 = arith.addf %18, %20 : vector<8x128xf32>
    %c0_17 = arith.constant 0 : index
    %c0_18 = arith.constant 0 : index
    %22 = vector.load %arg8[%c0_17, %c0_18] : memref<8x128xf32, #tpu.memory_space<vmem>>, vector<8x128xf32>
    tpu.vector_store %arg8[%c0_17, %c0_18], %21 {strides = array<i32>} : memref<8x128xf32, #tpu.memory_space<vmem>>, vector<8x128xf32>,
    return
  }
  func.func @transform_0(%arg0: i32) -> (i32, i32) {
    %c0_i32 = arith.constant 0 : i32
    %c0_i32_0 = arith.constant 0 : i32
    return %arg0, %c0_i32 : i32, i32
  }
  func.func @transform_1(%arg0: i32) -> (i32, i32) {
    %c0_i32 = arith.constant 0 : i32
    %c0_i32_0 = arith.constant 0 : i32
    %c0_i32_1 = arith.constant 0 : i32
    return %c0_i32, %c0_i32_0 : i32, i32
  }
  func.func @transform_2(%arg0: i32) -> (i32, i32) {
    %c0_i32 = arith.constant 0 : i32
    %c0_i32_0 = arith.constant 0 : i32
    %c0_i32_1 = arith.constant 0 : i32
    return %c0_i32, %c0_i32_0 : i32, i32
  }
  func.func @transform_3(%arg0: i32) -> (i32, i32) {
    %c0_i32 = arith.constant 0 : i32
    %c0_i32_0 = arith.constant 0 : i32
    %c0_i32_1 = arith.constant 0 : i32
    return %c0_i32, %c0_i32_0 : i32, i32
  }
  func.func @transform_4(%arg0: i32) -> (i32, i32) {
    %c0_i32 = arith.constant 0 : i32
    %c0_i32_0 = arith.constant 0 : i32
    %c0_i32_1 = arith.constant 0 : i32
    return %c0_i32, %c0_i32_0 : i32, i32
  }
  func.func @transform_5(%arg0: i32) -> (i32, i32) {
    %c0_i32 = arith.constant 0 : i32
    %c0_i32_0 = arith.constant 0 : i32
    %c0_i32_1 = arith.constant 0 : i32
    return %c0_i32, %c0_i32_0 : i32, i32
  }
  func.func @transform_6(%arg0: i32) -> (i32, i32) {
    %c0_i32 = arith.constant 0 : i32
    %c0_i32_0 = arith.constant 0 : i32
    %c0_i32_1 = arith.constant 0 : i32
    return %c0_i32, %c0_i32_0 : i32, i32
  }
  func.func @transform_7(%arg0: i32) -> (i32, i32) {
    %c0_i32 = arith.constant 0 : i32
    %c0_i32_0 = arith.constant 0 : i32
    return %arg0, %c0_i32 : i32, i32
  }
}

</mosaic_0001>

<llo_original>
// kernel: neural_network_forward.1
$region0: #{neural_network_forward.1}
  #allocation0 [shape = 'u32[]', space=smem, size = 0x4, offset = 0x4, fixed_abs, tag = 'smem constant byte address 0x4 - core index']
  #allocation1 [shape = 'u32[72,128]{1,0:T(1,128)}', space=vmem, size = 0x9000, scoped, tag = 'internal scratch']
  %s0 = inlined_call_operand.vmem [shape: bf16[8,896], index: 0, kind: input, shape index: {}]
  %s1 = inlined_call_operand.vmem [shape: bf16[896,512], index: 1, kind: input, shape index: {}]
  %s2 = inlined_call_operand.vmem [shape: f32[1,512], index: 2, kind: input, shape index: {}]
  %s3 = inlined_call_operand.vmem [shape: bf16[512,512], index: 3, kind: input, shape index: {}]
  %s4 = inlined_call_operand.vmem [shape: f32[1,512], index: 4, kind: input, shape index: {}]
  %s5 = inlined_call_operand.vmem [shape: bf16[512,128], index: 5, kind: input, shape index: {}]
  %s6 = inlined_call_operand.vmem [shape: f32[1,128], index: 6, kind: input, shape index: {}]
  %s7 = inlined_call_operand.hbm [shape: f32[8,128], index: 7, kind: output, shape index: {}]
  %s8 = sld [smem:[#allocation0]]
  $region38: #{neural_network_forward.1} parent=0
    _
  %s10 = ssub.s32 1, %s8
  %s11 = scalar_select 0, %s10, %s8
  $region1: #{neural_network_forward.1} parent=0
    #allocation2 [shape = 'u8[4096]{0}', space=vmem, size = 0x1000, scoped, tag = 'output window, operand 0, single buffered']
    #allocation3 [shape = 's32[1]{0}', space=sflag, size = 0x4, scoped, tag = 'scoped memory for neural_network_forward.1']
    %12 = vsyncpa [#allocation3], 0
    // Predicated region
    $region2: #{neural_network_forward.1} parent=1 // pred_check
      _
    $region3: #{neural_network_forward.1} parent=1 // pred_check_branch
      %14 = sbr.rel (0) target = $region5
    $region4: #{neural_network_forward.1} parent=1 // pred_region
      _
    $region5: #{neural_network_forward.1} parent=1 // pred_fallthru
      _
    // Predicated region
    $region6: #{neural_network_forward.1} parent=1 // pred_check
      _
    $region7: #{neural_network_forward.1} parent=1 // pred_check_branch
      %16 = sbr.rel (0) target = $region9
    $region8: #{neural_network_forward.1} parent=1 // pred_region
      _
    $region9: #{neural_network_forward.1} parent=1 // pred_fallthru
      _
    // Predicated region
    $region10: #{neural_network_forward.1} parent=1 // pred_check
      _
    $region11: #{neural_network_forward.1} parent=1 // pred_check_branch
      %18 = sbr.rel (0) target = $region13
    $region12: #{neural_network_forward.1} parent=1 // pred_region
      _
    $region13: #{neural_network_forward.1} parent=1 // pred_fallthru
      _
    // Predicated region
    $region14: #{neural_network_forward.1} parent=1 // pred_check
      _
    $region15: #{neural_network_forward.1} parent=1 // pred_check_branch
      %20 = sbr.rel (0) target = $region17
    $region16: #{neural_network_forward.1} parent=1 // pred_region
      _
    $region17: #{neural_network_forward.1} parent=1 // pred_fallthru
      _
    // Predicated region
    $region18: #{neural_network_forward.1} parent=1 // pred_check
      _
    $region19: #{neural_network_forward.1} parent=1 // pred_check_branch
      %22 = sbr.rel (0) target = $region21
    $region20: #{neural_network_forward.1} parent=1 // pred_region
      _
    $region21: #{neural_network_forward.1} parent=1 // pred_fallthru
      _
    // Predicated region
    $region22: #{neural_network_forward.1} parent=1 // pred_check
      _
    $region23: #{neural_network_forward.1} parent=1 // pred_check_branch
      %24 = sbr.rel (0) target = $region25
    $region24: #{neural_network_forward.1} parent=1 // pred_region
      _
    $region25: #{neural_network_forward.1} parent=1 // pred_fallthru
      _
    // Predicated region
    $region26: #{neural_network_forward.1} parent=1 // pred_check
      _
    $region27: #{neural_network_forward.1} parent=1 // pred_check_branch
      %26 = sbr.rel (0) target = $region29
    $region28: #{neural_network_forward.1} parent=1 // pred_region
      _
    $region29: #{neural_network_forward.1} parent=1 // pred_fallthru
      _
    %v27 = vld [vmem:[%s0] sm:$0xff]
    %v28 = vld [vmem:[%s0 + $0x8] sm:$0xff]
    %v29 = vld [vmem:[%s0 + $0x10] sm:$0xff]
    %v30 = vld [vmem:[%s0 + $0x18] sm:$0xf]
    %v31 = vld [vmem:[%s1] sm:$0xff]
    %v32 = vld [vmem:[%s1 + $0x8] sm:$0xff]
    %v33 = vld [vmem:[%s1 + $0x10] sm:$0xff]
    %v34 = vld [vmem:[%s1 + $0x18] sm:$0xff]
    %v35 = vld [vmem:[%s1 + $0x20] sm:$0xff]
    %v36 = vld [vmem:[%s1 + $0x28] sm:$0xff]
    %v37 = vld [vmem:[%s1 + $0x30] sm:$0xff]
    %v38 = vld [vmem:[%s1 + $0x38] sm:$0xff]
    %v39 = vld [vmem:[%s1 + $0x40] sm:$0xff]
    %v40 = vld [vmem:[%s1 + $0x48] sm:$0xff]
    %v41 = vld [vmem:[%s1 + $0x50] sm:$0xff]
    %v42 = vld [vmem:[%s1 + $0x58] sm:$0xff]
    %v43 = vld [vmem:[%s1 + $0x60] sm:$0xff]
    %v44 = vld [vmem:[%s1 + $0x68] sm:$0xff]
    %v45 = vld [vmem:[%s1 + $0x70] sm:$0xff]
    %v46 = vld [vmem:[%s1 + $0x78] sm:$0xff]
    %v47 = vld [vmem:[%s1 + $0x80] sm:$0xff]
    %v48 = vld [vmem:[%s1 + $0x88] sm:$0xff]
    %v49 = vld [vmem:[%s1 + $0x90] sm:$0xff]
    %v50 = vld [vmem:[%s1 + $0x98] sm:$0xff]
    %v51 = vld [vmem:[%s1 + $0xa0] sm:$0xff]
    %v52 = vld [vmem:[%s1 + $0xa8] sm:$0xff]
    %v53 = vld [vmem:[%s1 + $0xb0] sm:$0xff]
    %v54 = vld [vmem:[%s1 + $0xb8] sm:$0xff]
    %v55 = vld [vmem:[%s1 + $0xc0] sm:$0xff]
    %v56 = vld [vmem:[%s1 + $0xc8] sm:$0xff]
    %v57 = vld [vmem:[%s1 + $0xd0] sm:$0xff]
    %v58 = vld [vmem:[%s1 + $0xd8] sm:$0xff]
    %v59 = vld [vmem:[%s1 + $0xe0] sm:$0xff]
    %v60 = vld [vmem:[%s1 + $0xe8] sm:$0xff]
    %v61 = vld [vmem:[%s1 + $0xf0] sm:$0xff]
    %v62 = vld [vmem:[%s1 + $0xf8] sm:$0xff]
    %v63 = vld [vmem:[%s1 + $0x100] sm:$0xff]
    %v64 = vld [vmem:[%s1 + $0x108] sm:$0xff]
    %v65 = vld [vmem:[%s1 + $0x110] sm:$0xff]
    %v66 = vld [vmem:[%s1 + $0x118] sm:$0xff]
    %v67 = vld [vmem:[%s1 + $0x120] sm:$0xff]
    %v68 = vld [vmem:[%s1 + $0x128] sm:$0xff]
    %v69 = vld [vmem:[%s1 + $0x130] sm:$0xff]
    %v70 = vld [vmem:[%s1 + $0x138] sm:$0xff]
    %v71 = vld [vmem:[%s1 + $0x140] sm:$0xff]
    %v72 = vld [vmem:[%s1 + $0x148] sm:$0xff]
    %v73 = vld [vmem:[%s1 + $0x150] sm:$0xff]
    %v74 = vld [vmem:[%s1 + $0x158] sm:$0xff]
    %v75 = vld [vmem:[%s1 + $0x160] sm:$0xff]
    %v76 = vld [vmem:[%s1 + $0x168] sm:$0xff]
    %v77 = vld [vmem:[%s1 + $0x170] sm:$0xff]
    %v78 = vld [vmem:[%s1 + $0x178] sm:$0xff]
    %v79 = vld [vmem:[%s1 + $0x180] sm:$0xff]
    %v80 = vld [vmem:[%s1 + $0x188] sm:$0xff]
    %v81 = vld [vmem:[%s1 + $0x190] sm:$0xff]
    %v82 = vld [vmem:[%s1 + $0x198] sm:$0xff]
    %v83 = vld [vmem:[%s1 + $0x1a0] sm:$0xff]
    %v84 = vld [vmem:[%s1 + $0x1a8] sm:$0xff]
    %v85 = vld [vmem:[%s1 + $0x1b0] sm:$0xff]
    %v86 = vld [vmem:[%s1 + $0x1b8] sm:$0xff]
    %v87 = vld [vmem:[%s1 + $0x1c0] sm:$0xff]
    %v88 = vld [vmem:[%s1 + $0x1c8] sm:$0xff]
    %v89 = vld [vmem:[%s1 + $0x1d0] sm:$0xff]
    %v90 = vld [vmem:[%s1 + $0x1d8] sm:$0xff]
    %v91 = vld [vmem:[%s1 + $0x1e0] sm:$0xff]
    %v92 = vld [vmem:[%s1 + $0x1e8] sm:$0xff]
    %v93 = vld [vmem:[%s1 + $0x1f0] sm:$0xff]
    %v94 = vld [vmem:[%s1 + $0x1f8] sm:$0xff]
    %v95 = vld [vmem:[%s1 + $0x200] sm:$0xff]
    %v96 = vld [vmem:[%s1 + $0x208] sm:$0xff]
    %v97 = vld [vmem:[%s1 + $0x210] sm:$0xff]
    %v98 = vld [vmem:[%s1 + $0x218] sm:$0xff]
    %v99 = vld [vmem:[%s1 + $0x220] sm:$0xff]
    %v100 = vld [vmem:[%s1 + $0x228] sm:$0xff]
    %v101 = vld [vmem:[%s1 + $0x230] sm:$0xff]
    %v102 = vld [vmem:[%s1 + $0x238] sm:$0xff]
    %v103 = vld [vmem:[%s1 + $0x240] sm:$0xff]
    %v104 = vld [vmem:[%s1 + $0x248] sm:$0xff]
    %v105 = vld [vmem:[%s1 + $0x250] sm:$0xff]
    %v106 = vld [vmem:[%s1 + $0x258] sm:$0xff]
    %v107 = vld [vmem:[%s1 + $0x260] sm:$0xff]
    %v108 = vld [vmem:[%s1 + $0x268] sm:$0xff]
    %v109 = vld [vmem:[%s1 + $0x270] sm:$0xff]
    %v110 = vld [vmem:[%s1 + $0x278] sm:$0xff]
    %v111 = vld [vmem:[%s1 + $0x280] sm:$0xff]
    %v112 = vld [vmem:[%s1 + $0x288] sm:$0xff]
    %v113 = vld [vmem:[%s1 + $0x290] sm:$0xff]
    %v114 = vld [vmem:[%s1 + $0x298] sm:$0xff]
    %v115 = vld [vmem:[%s1 + $0x2a0] sm:$0xff]
    %v116 = vld [vmem:[%s1 + $0x2a8] sm:$0xff]
    %v117 = vld [vmem:[%s1 + $0x2b0] sm:$0xff]
    %v118 = vld [vmem:[%s1 + $0x2b8] sm:$0xff]
    %v119 = vld [vmem:[%s1 + $0x2c0] sm:$0xff]
    %v120 = vld [vmem:[%s1 + $0x2c8] sm:$0xff]
    %v121 = vld [vmem:[%s1 + $0x2d0] sm:$0xff]
    %v122 = vld [vmem:[%s1 + $0x2d8] sm:$0xff]
    %v123 = vld [vmem:[%s1 + $0x2e0] sm:$0xff]
    %v124 = vld [vmem:[%s1 + $0x2e8] sm:$0xff]
    %v125 = vld [vmem:[%s1 + $0x2f0] sm:$0xff]
    %v126 = vld [vmem:[%s1 + $0x2f8] sm:$0xff]
    %v127 = vld [vmem:[%s1 + $0x300] sm:$0xff]
    %v128 = vld [vmem:[%s1 + $0x308] sm:$0xff]
    %v129 = vld [vmem:[%s1 + $0x310] sm:$0xff]
    %v130 = vld [vmem:[%s1 + $0x318] sm:$0xff]
    %v131 = vld [vmem:[%s1 + $0x320] sm:$0xff]
    %v132 = vld [vmem:[%s1 + $0x328] sm:$0xff]
    %v133 = vld [vmem:[%s1 + $0x330] sm:$0xff]
    %v134 = vld [vmem:[%s1 + $0x338] sm:$0xff]
    %v135 = vld [vmem:[%s1 + $0x340] sm:$0xff]
    %v136 = vld [vmem:[%s1 + $0x348] sm:$0xff]
    %v137 = vld [vmem:[%s1 + $0x350] sm:$0xff]
    %v138 = vld [vmem:[%s1 + $0x358] sm:$0xff]
    %v139 = vld [vmem:[%s1 + $0x360] sm:$0xff]
    %v140 = vld [vmem:[%s1 + $0x368] sm:$0xff]
    %v141 = vld [vmem:[%s1 + $0x370] sm:$0xff]
    %v142 = vld [vmem:[%s1 + $0x378] sm:$0xff]
    %v143 = vld [vmem:[%s1 + $0x380] sm:$0xff]
    %v144 = vld [vmem:[%s1 + $0x388] sm:$0xff]
    %v145 = vld [vmem:[%s1 + $0x390] sm:$0xff]
    %v146 = vld [vmem:[%s1 + $0x398] sm:$0xff]
    %v147 = vld [vmem:[%s1 + $0x3a0] sm:$0xff]
    %v148 = vld [vmem:[%s1 + $0x3a8] sm:$0xff]
    %v149 = vld [vmem:[%s1 + $0x3b0] sm:$0xff]
    %v150 = vld [vmem:[%s1 + $0x3b8] sm:$0xff]
    %v151 = vld [vmem:[%s1 + $0x3c0] sm:$0xff]
    %v152 = vld [vmem:[%s1 + $0x3c8] sm:$0xff]
    %v153 = vld [vmem:[%s1 + $0x3d0] sm:$0xff]
    %v154 = vld [vmem:[%s1 + $0x3d8] sm:$0xff]
    %v155 = vld [vmem:[%s1 + $0x3e0] sm:$0xff]
    %v156 = vld [vmem:[%s1 + $0x3e8] sm:$0xff]
    %v157 = vld [vmem:[%s1 + $0x3f0] sm:$0xff]
    %v158 = vld [vmem:[%s1 + $0x3f8] sm:$0xff]
    %v159 = vld [vmem:[%s1 + $0x400] sm:$0xff]
    %v160 = vld [vmem:[%s1 + $0x408] sm:$0xff]
    %v161 = vld [vmem:[%s1 + $0x410] sm:$0xff]
    %v162 = vld [vmem:[%s1 + $0x418] sm:$0xff]
    %v163 = vld [vmem:[%s1 + $0x420] sm:$0xff]
    %v164 = vld [vmem:[%s1 + $0x428] sm:$0xff]
    %v165 = vld [vmem:[%s1 + $0x430] sm:$0xff]
    %v166 = vld [vmem:[%s1 + $0x438] sm:$0xff]
    %v167 = vld [vmem:[%s1 + $0x440] sm:$0xff]
    %v168 = vld [vmem:[%s1 + $0x448] sm:$0xff]
    %v169 = vld [vmem:[%s1 + $0x450] sm:$0xff]
    %v170 = vld [vmem:[%s1 + $0x458] sm:$0xff]
    %v171 = vld [vmem:[%s1 + $0x460] sm:$0xff]
    %v172 = vld [vmem:[%s1 + $0x468] sm:$0xff]
    %v173 = vld [vmem:[%s1 + $0x470] sm:$0xff]
    %v174 = vld [vmem:[%s1 + $0x478] sm:$0xff]
    %v175 = vld [vmem:[%s1 + $0x480] sm:$0xff]
    %v176 = vld [vmem:[%s1 + $0x488] sm:$0xff]
    %v177 = vld [vmem:[%s1 + $0x490] sm:$0xff]
    %v178 = vld [vmem:[%s1 + $0x498] sm:$0xff]
    %v179 = vld [vmem:[%s1 + $0x4a0] sm:$0xff]
    %v180 = vld [vmem:[%s1 + $0x4a8] sm:$0xff]
    %v181 = vld [vmem:[%s1 + $0x4b0] sm:$0xff]
    %v182 = vld [vmem:[%s1 + $0x4b8] sm:$0xff]
    %v183 = vld [vmem:[%s1 + $0x4c0] sm:$0xff]
    %v184 = vld [vmem:[%s1 + $0x4c8] sm:$0xff]
    %v185 = vld [vmem:[%s1 + $0x4d0] sm:$0xff]
    %v186 = vld [vmem:[%s1 + $0x4d8] sm:$0xff]
    %v187 = vld [vmem:[%s1 + $0x4e0] sm:$0xff]
    %v188 = vld [vmem:[%s1 + $0x4e8] sm:$0xff]
    %v189 = vld [vmem:[%s1 + $0x4f0] sm:$0xff]
    %v190 = vld [vmem:[%s1 + $0x4f8] sm:$0xff]
    %v191 = vld [vmem:[%s1 + $0x500] sm:$0xff]
    %v192 = vld [vmem:[%s1 + $0x508] sm:$0xff]
    %v193 = vld [vmem:[%s1 + $0x510] sm:$0xff]
    %v194 = vld [vmem:[%s1 + $0x518] sm:$0xff]
    %v195 = vld [vmem:[%s1 + $0x520] sm:$0xff]
    %v196 = vld [vmem:[%s1 + $0x528] sm:$0xff]
    %v197 = vld [vmem:[%s1 + $0x530] sm:$0xff]
    %v198 = vld [vmem:[%s1 + $0x538] sm:$0xff]
    %v199 = vld [vmem:[%s1 + $0x540] sm:$0xff]
    %v200 = vld [vmem:[%s1 + $0x548] sm:$0xff]
    %v201 = vld [vmem:[%s1 + $0x550] sm:$0xff]
    %v202 = vld [vmem:[%s1 + $0x558] sm:$0xff]
    %v203 = vld [vmem:[%s1 + $0x560] sm:$0xff]
    %v204 = vld [vmem:[%s1 + $0x568] sm:$0xff]
    %v205 = vld [vmem:[%s1 + $0x570] sm:$0xff]
    %v206 = vld [vmem:[%s1 + $0x578] sm:$0xff]
    %v207 = vld [vmem:[%s1 + $0x580] sm:$0xff]
    %v208 = vld [vmem:[%s1 + $0x588] sm:$0xff]
    %v209 = vld [vmem:[%s1 + $0x590] sm:$0xff]
    %v210 = vld [vmem:[%s1 + $0x598] sm:$0xff]
    %v211 = vld [vmem:[%s1 + $0x5a0] sm:$0xff]
    %v212 = vld [vmem:[%s1 + $0x5a8] sm:$0xff]
    %v213 = vld [vmem:[%s1 + $0x5b0] sm:$0xff]
    %v214 = vld [vmem:[%s1 + $0x5b8] sm:$0xff]
    %v215 = vld [vmem:[%s1 + $0x5c0] sm:$0xff]
    %v216 = vld [vmem:[%s1 + $0x5c8] sm:$0xff]
    %v217 = vld [vmem:[%s1 + $0x5d0] sm:$0xff]
    %v218 = vld [vmem:[%s1 + $0x5d8] sm:$0xff]
    %v219 = vld [vmem:[%s1 + $0x5e0] sm:$0xff]
    %v220 = vld [vmem:[%s1 + $0x5e8] sm:$0xff]
    %v221 = vld [vmem:[%s1 + $0x5f0] sm:$0xff]
    %v222 = vld [vmem:[%s1 + $0x5f8] sm:$0xff]
    %v223 = vld [vmem:[%s1 + $0x600] sm:$0xff]
    %v224 = vld [vmem:[%s1 + $0x608] sm:$0xff]
    %v225 = vld [vmem:[%s1 + $0x610] sm:$0xff]
    %v226 = vld [vmem:[%s1 + $0x618] sm:$0xff]
    %v227 = vld [vmem:[%s1 + $0x620] sm:$0xff]
    %v228 = vld [vmem:[%s1 + $0x628] sm:$0xff]
    %v229 = vld [vmem:[%s1 + $0x630] sm:$0xff]
    %v230 = vld [vmem:[%s1 + $0x638] sm:$0xff]
    %v231 = vld [vmem:[%s1 + $0x640] sm:$0xff]
    %v232 = vld [vmem:[%s1 + $0x648] sm:$0xff]
    %v233 = vld [vmem:[%s1 + $0x650] sm:$0xff]
    %v234 = vld [vmem:[%s1 + $0x658] sm:$0xff]
    %v235 = vld [vmem:[%s1 + $0x660] sm:$0xff]
    %v236 = vld [vmem:[%s1 + $0x668] sm:$0xff]
    %v237 = vld [vmem:[%s1 + $0x670] sm:$0xff]
    %v238 = vld [vmem:[%s1 + $0x678] sm:$0xff]
    %v239 = vld [vmem:[%s1 + $0x680] sm:$0xff]
    %v240 = vld [vmem:[%s1 + $0x688] sm:$0xff]
    %v241 = vld [vmem:[%s1 + $0x690] sm:$0xff]
    %v242 = vld [vmem:[%s1 + $0x698] sm:$0xff]
    %v243 = vld [vmem:[%s1 + $0x6a0] sm:$0xff]
    %v244 = vld [vmem:[%s1 + $0x6a8] sm:$0xff]
    %v245 = vld [vmem:[%s1 + $0x6b0] sm:$0xff]
    %v246 = vld [vmem:[%s1 + $0x6b8] sm:$0xff]
    %v247 = vld [vmem:[%s1 + $0x6c0] sm:$0xff]
    %v248 = vld [vmem:[%s1 + $0x6c8] sm:$0xff]
    %v249 = vld [vmem:[%s1 + $0x6d0] sm:$0xff]
    %v250 = vld [vmem:[%s1 + $0x6d8] sm:$0xff]
    %v251 = vld [vmem:[%s1 + $0x6e0] sm:$0xff]
    %v252 = vld [vmem:[%s1 + $0x6e8] sm:$0xff]
    %v253 = vld [vmem:[%s1 + $0x6f0] sm:$0xff]
    %v254 = vld [vmem:[%s1 + $0x6f8] sm:$0xff]
    %v255 = vld [vmem:[%s2] sm:$0xf]
    %v257 = vperm.slane %v255, 0
    %v258 = vperm.slane %v255, 1
    %v259 = vperm.slane %v255, 2
    %v260 = vperm.slane %v255, 3
    %v269 = vunpack.c.l.b16 %v27
    %v270 = vunpack.c.h.b16 %v27
    %v271 = vunpack.c.l.b16 %v28
    %v272 = vunpack.c.h.b16 %v28
    %v273 = vunpack.c.l.b16 %v29
    %v274 = vunpack.c.h.b16 %v29
    %v275 = vunpack.c.l.b16 %v30
    %v276 = vpack.c.b16 %v269, %v269
    %v277 = vpack.c.b16 %v270, %v270
    %v278 = vpack.c.b16 %v271, %v271
    %v279 = vpack.c.b16 %v272, %v272
    %v280 = vpack.c.b16 %v273, %v273
    %v281 = vpack.c.b16 %v274, %v274
    %v282 = vpack.c.b16 %v275, %v275
    %v514 = vunpack.c.l.b16 %v31
    %v515 = vunpack.c.h.b16 %v31
    %v516 = vunpack.c.l.b16 %v32
    %v517 = vunpack.c.h.b16 %v32
    %v518 = vunpack.c.l.b16 %v33
    %v519 = vunpack.c.h.b16 %v33
    %v520 = vunpack.c.l.b16 %v34
    %v521 = vunpack.c.h.b16 %v34
    %v522 = vunpack.c.l.b16 %v35
    %v523 = vunpack.c.h.b16 %v35
    %v524 = vunpack.c.l.b16 %v36
    %v525 = vunpack.c.h.b16 %v36
    %v526 = vunpack.c.l.b16 %v37
    %v527 = vunpack.c.h.b16 %v37
    %v528 = vunpack.c.l.b16 %v38
    %v529 = vunpack.c.h.b16 %v38
    %v530 = vunpack.c.l.b16 %v39
    %v531 = vunpack.c.h.b16 %v39
    %v532 = vunpack.c.l.b16 %v40
    %v533 = vunpack.c.h.b16 %v40
    %v534 = vunpack.c.l.b16 %v41
    %v535 = vunpack.c.h.b16 %v41
    %v536 = vunpack.c.l.b16 %v42
    %v537 = vunpack.c.h.b16 %v42
    %v538 = vunpack.c.l.b16 %v43
    %v539 = vunpack.c.h.b16 %v43
    %v540 = vunpack.c.l.b16 %v44
    %v541 = vunpack.c.h.b16 %v44
    %v542 = vunpack.c.l.b16 %v45
    %v543 = vunpack.c.h.b16 %v45
    %v544 = vunpack.c.l.b16 %v46
    %v545 = vunpack.c.h.b16 %v46
    %v546 = vunpack.c.l.b16 %v47
    %v547 = vunpack.c.h.b16 %v47
    %v548 = vunpack.c.l.b16 %v48
    %v549 = vunpack.c.h.b16 %v48
    %v550 = vunpack.c.l.b16 %v49
    %v551 = vunpack.c.h.b16 %v49
    %v552 = vunpack.c.l.b16 %v50
    %v553 = vunpack.c.h.b16 %v50
    %v554 = vunpack.c.l.b16 %v51
    %v555 = vunpack.c.h.b16 %v51
    %v556 = vunpack.c.l.b16 %v52
    %v557 = vunpack.c.h.b16 %v52
    %v558 = vunpack.c.l.b16 %v53
    %v559 = vunpack.c.h.b16 %v53
    %v560 = vunpack.c.l.b16 %v54
    %v561 = vunpack.c.h.b16 %v54
    %v562 = vunpack.c.l.b16 %v55
    %v563 = vunpack.c.h.b16 %v55
    %v564 = vunpack.c.l.b16 %v56
    %v565 = vunpack.c.h.b16 %v56
    %v566 = vunpack.c.l.b16 %v57
    %v567 = vunpack.c.h.b16 %v57
    %v568 = vunpack.c.l.b16 %v58
    %v569 = vunpack.c.h.b16 %v58
    %v570 = vunpack.c.l.b16 %v59
    %v571 = vunpack.c.h.b16 %v59
    %v572 = vunpack.c.l.b16 %v60
    %v573 = vunpack.c.h.b16 %v60
    %v574 = vunpack.c.l.b16 %v61
    %v575 = vunpack.c.h.b16 %v61
    %v576 = vunpack.c.l.b16 %v62
    %v577 = vunpack.c.h.b16 %v62
    %v578 = vunpack.c.l.b16 %v63
    %v579 = vunpack.c.h.b16 %v63
    %v580 = vunpack.c.l.b16 %v64
    %v581 = vunpack.c.h.b16 %v64
    %v582 = vunpack.c.l.b16 %v65
    %v583 = vunpack.c.h.b16 %v65
    %v584 = vunpack.c.l.b16 %v66
    %v585 = vunpack.c.h.b16 %v66
    %v586 = vunpack.c.l.b16 %v67
    %v587 = vunpack.c.h.b16 %v67
    %v588 = vunpack.c.l.b16 %v68
    %v589 = vunpack.c.h.b16 %v68
    %v590 = vunpack.c.l.b16 %v69
    %v591 = vunpack.c.h.b16 %v69
    %v592 = vunpack.c.l.b16 %v70
    %v593 = vunpack.c.h.b16 %v70
    %v594 = vunpack.c.l.b16 %v71
    %v595 = vunpack.c.h.b16 %v71
    %v596 = vunpack.c.l.b16 %v72
    %v597 = vunpack.c.h.b16 %v72
    %v598 = vunpack.c.l.b16 %v73
    %v599 = vunpack.c.h.b16 %v73
    %v600 = vunpack.c.l.b16 %v74
    %v601 = vunpack.c.h.b16 %v74
    %v602 = vunpack.c.l.b16 %v75
    %v603 = vunpack.c.h.b16 %v75
    %v604 = vunpack.c.l.b16 %v76
    %v605 = vunpack.c.h.b16 %v76
    %v606 = vunpack.c.l.b16 %v77
    %v607 = vunpack.c.h.b16 %v77
    %v608 = vunpack.c.l.b16 %v78
    %v609 = vunpack.c.h.b16 %v78
    %v610 = vunpack.c.l.b16 %v79
    %v611 = vunpack.c.h.b16 %v79
    %v612 = vunpack.c.l.b16 %v80
    %v613 = vunpack.c.h.b16 %v80
    %v614 = vunpack.c.l.b16 %v81
    %v615 = vunpack.c.h.b16 %v81
    %v616 = vunpack.c.l.b16 %v82
    %v617 = vunpack.c.h.b16 %v82
    %v618 = vunpack.c.l.b16 %v83
    %v619 = vunpack.c.h.b16 %v83
    %v620 = vunpack.c.l.b16 %v84
    %v621 = vunpack.c.h.b16 %v84
    %v622 = vunpack.c.l.b16 %v85
    %v623 = vunpack.c.h.b16 %v85
    %v624 = vunpack.c.l.b16 %v86
    %v625 = vunpack.c.h.b16 %v86
    %v626 = vunpack.c.l.b16 %v87
    %v627 = vunpack.c.h.b16 %v87
    %v628 = vunpack.c.l.b16 %v88
    %v629 = vunpack.c.h.b16 %v88
    %v630 = vunpack.c.l.b16 %v89
    %v631 = vunpack.c.h.b16 %v89
    %v632 = vunpack.c.l.b16 %v90
    %v633 = vunpack.c.h.b16 %v90
    %v634 = vunpack.c.l.b16 %v91
    %v635 = vunpack.c.h.b16 %v91
    %v636 = vunpack.c.l.b16 %v92
    %v637 = vunpack.c.h.b16 %v92
    %v638 = vunpack.c.l.b16 %v93
    %v639 = vunpack.c.h.b16 %v93
    %v640 = vunpack.c.l.b16 %v94
    %v641 = vunpack.c.h.b16 %v94
    %v642 = vunpack.c.l.b16 %v95
    %v643 = vunpack.c.h.b16 %v95
    %v644 = vunpack.c.l.b16 %v96
    %v645 = vunpack.c.h.b16 %v96
    %v646 = vunpack.c.l.b16 %v97
    %v647 = vunpack.c.h.b16 %v97
    %v648 = vunpack.c.l.b16 %v98
    %v649 = vunpack.c.h.b16 %v98
    %v650 = vunpack.c.l.b16 %v99
    %v651 = vunpack.c.h.b16 %v99
    %v652 = vunpack.c.l.b16 %v100
    %v653 = vunpack.c.h.b16 %v100
    %v654 = vunpack.c.l.b16 %v101
    %v655 = vunpack.c.h.b16 %v101
    %v656 = vunpack.c.l.b16 %v102
    %v657 = vunpack.c.h.b16 %v102
    %v658 = vunpack.c.l.b16 %v103
    %v659 = vunpack.c.h.b16 %v103
    %v660 = vunpack.c.l.b16 %v104
    %v661 = vunpack.c.h.b16 %v104
    %v662 = vunpack.c.l.b16 %v105
    %v663 = vunpack.c.h.b16 %v105
    %v664 = vunpack.c.l.b16 %v106
    %v665 = vunpack.c.h.b16 %v106
    %v666 = vunpack.c.l.b16 %v107
    %v667 = vunpack.c.h.b16 %v107
    %v668 = vunpack.c.l.b16 %v108
    %v669 = vunpack.c.h.b16 %v108
    %v670 = vunpack.c.l.b16 %v109
    %v671 = vunpack.c.h.b16 %v109
    %v672 = vunpack.c.l.b16 %v110
    %v673 = vunpack.c.h.b16 %v110
    %v674 = vunpack.c.l.b16 %v111
    %v675 = vunpack.c.h.b16 %v111
    %v676 = vunpack.c.l.b16 %v112
    %v677 = vunpack.c.h.b16 %v112
    %v678 = vunpack.c.l.b16 %v113
    %v679 = vunpack.c.h.b16 %v113
    %v680 = vunpack.c.l.b16 %v114
    %v681 = vunpack.c.h.b16 %v114
    %v682 = vunpack.c.l.b16 %v115
    %v683 = vunpack.c.h.b16 %v115
    %v684 = vunpack.c.l.b16 %v116
    %v685 = vunpack.c.h.b16 %v116
    %v686 = vunpack.c.l.b16 %v117
    %v687 = vunpack.c.h.b16 %v117
    %v688 = vunpack.c.l.b16 %v118
    %v689 = vunpack.c.h.b16 %v118
    %v690 = vunpack.c.l.b16 %v119
    %v691 = vunpack.c.h.b16 %v119
    %v692 = vunpack.c.l.b16 %v120
    %v693 = vunpack.c.h.b16 %v120
    %v694 = vunpack.c.l.b16 %v121
    %v695 = vunpack.c.h.b16 %v121
    %v696 = vunpack.c.l.b16 %v122
    %v697 = vunpack.c.h.b16 %v122
    %v698 = vunpack.c.l.b16 %v123
    %v699 = vunpack.c.h.b16 %v123
    %v700 = vunpack.c.l.b16 %v124
    %v701 = vunpack.c.h.b16 %v124
    %v702 = vunpack.c.l.b16 %v125
    %v703 = vunpack.c.h.b16 %v125
    %v704 = vunpack.c.l.b16 %v126
    %v705 = vunpack.c.h.b16 %v126
    %v706 = vunpack.c.l.b16 %v127
    %v707 = vunpack.c.h.b16 %v127
    %v708 = vunpack.c.l.b16 %v128
    %v709 = vunpack.c.h.b16 %v128
    %v710 = vunpack.c.l.b16 %v129
    %v711 = vunpack.c.h.b16 %v129
    %v712 = vunpack.c.l.b16 %v130
    %v713 = vunpack.c.h.b16 %v130
    %v714 = vunpack.c.l.b16 %v131
    %v715 = vunpack.c.h.b16 %v131
    %v716 = vunpack.c.l.b16 %v132
    %v717 = vunpack.c.h.b16 %v132
    %v718 = vunpack.c.l.b16 %v133
    %v719 = vunpack.c.h.b16 %v133
    %v720 = vunpack.c.l.b16 %v134
    %v721 = vunpack.c.h.b16 %v134
    %v722 = vunpack.c.l.b16 %v135
    %v723 = vunpack.c.h.b16 %v135
    %v724 = vunpack.c.l.b16 %v136
    %v725 = vunpack.c.h.b16 %v136
    %v726 = vunpack.c.l.b16 %v137
    %v727 = vunpack.c.h.b16 %v137
    %v728 = vunpack.c.l.b16 %v138
    %v729 = vunpack.c.h.b16 %v138
    %v730 = vunpack.c.l.b16 %v139
    %v731 = vunpack.c.h.b16 %v139
    %v732 = vunpack.c.l.b16 %v140
    %v733 = vunpack.c.h.b16 %v140
    %v734 = vunpack.c.l.b16 %v141
    %v735 = vunpack.c.h.b16 %v141
    %v736 = vunpack.c.l.b16 %v142
    %v737 = vunpack.c.h.b16 %v142
    %v738 = vunpack.c.l.b16 %v143
    %v739 = vunpack.c.h.b16 %v143
    %v740 = vunpack.c.l.b16 %v144
    %v741 = vunpack.c.h.b16 %v144
    %v742 = vunpack.c.l.b16 %v145
    %v743 = vunpack.c.h.b16 %v145
    %v744 = vunpack.c.l.b16 %v146
    %v745 = vunpack.c.h.b16 %v146
    %v746 = vunpack.c.l.b16 %v147
    %v747 = vunpack.c.h.b16 %v147
    %v748 = vunpack.c.l.b16 %v148
    %v749 = vunpack.c.h.b16 %v148
    %v750 = vunpack.c.l.b16 %v149
    %v751 = vunpack.c.h.b16 %v149
    %v752 = vunpack.c.l.b16 %v150
    %v753 = vunpack.c.h.b16 %v150
    %v754 = vunpack.c.l.b16 %v151
    %v755 = vunpack.c.h.b16 %v151
    %v756 = vunpack.c.l.b16 %v152
    %v757 = vunpack.c.h.b16 %v152
    %v758 = vunpack.c.l.b16 %v153
    %v759 = vunpack.c.h.b16 %v153
    %v760 = vunpack.c.l.b16 %v154
    %v761 = vunpack.c.h.b16 %v154
    %v762 = vunpack.c.l.b16 %v155
    %v763 = vunpack.c.h.b16 %v155
    %v764 = vunpack.c.l.b16 %v156
    %v765 = vunpack.c.h.b16 %v156
    %v766 = vunpack.c.l.b16 %v157
    %v767 = vunpack.c.h.b16 %v157
    %v768 = vunpack.c.l.b16 %v158
    %v769 = vunpack.c.h.b16 %v158
    %v770 = vunpack.c.l.b16 %v159
    %v771 = vunpack.c.h.b16 %v159
    %v772 = vunpack.c.l.b16 %v160
    %v773 = vunpack.c.h.b16 %v160
    %v774 = vunpack.c.l.b16 %v161
    %v775 = vunpack.c.h.b16 %v161
    %v776 = vunpack.c.l.b16 %v162
    %v777 = vunpack.c.h.b16 %v162
    %v778 = vunpack.c.l.b16 %v163
    %v779 = vunpack.c.h.b16 %v163
    %v780 = vunpack.c.l.b16 %v164
    %v781 = vunpack.c.h.b16 %v164
    %v782 = vunpack.c.l.b16 %v165
    %v783 = vunpack.c.h.b16 %v165
    %v784 = vunpack.c.l.b16 %v166
    %v785 = vunpack.c.h.b16 %v166
    %v786 = vunpack.c.l.b16 %v167
    %v787 = vunpack.c.h.b16 %v167
    %v788 = vunpack.c.l.b16 %v168
    %v789 = vunpack.c.h.b16 %v168
    %v790 = vunpack.c.l.b16 %v169
    %v791 = vunpack.c.h.b16 %v169
    %v792 = vunpack.c.l.b16 %v170
    %v793 = vunpack.c.h.b16 %v170
    %v794 = vunpack.c.l.b16 %v171
    %v795 = vunpack.c.h.b16 %v171
    %v796 = vunpack.c.l.b16 %v172
    %v797 = vunpack.c.h.b16 %v172
    %v798 = vunpack.c.l.b16 %v173
    %v799 = vunpack.c.h.b16 %v173
    %v800 = vunpack.c.l.b16 %v174
    %v801 = vunpack.c.h.b16 %v174
    %v802 = vunpack.c.l.b16 %v175
    %v803 = vunpack.c.h.b16 %v175
    %v804 = vunpack.c.l.b16 %v176
    %v805 = vunpack.c.h.b16 %v176
    %v806 = vunpack.c.l.b16 %v177
    %v807 = vunpack.c.h.b16 %v177
    %v808 = vunpack.c.l.b16 %v178
    %v809 = vunpack.c.h.b16 %v178
    %v810 = vunpack.c.l.b16 %v179
    %v811 = vunpack.c.h.b16 %v179
    %v812 = vunpack.c.l.b16 %v180
    %v813 = vunpack.c.h.b16 %v180
    %v814 = vunpack.c.l.b16 %v181
    %v815 = vunpack.c.h.b16 %v181
    %v816 = vunpack.c.l.b16 %v182
    %v817 = vunpack.c.h.b16 %v182
    %v818 = vunpack.c.l.b16 %v183
    %v819 = vunpack.c.h.b16 %v183
    %v820 = vunpack.c.l.b16 %v184
    %v821 = vunpack.c.h.b16 %v184
    %v822 = vunpack.c.l.b16 %v185
    %v823 = vunpack.c.h.b16 %v185
    %v824 = vunpack.c.l.b16 %v186
    %v825 = vunpack.c.h.b16 %v186
    %v826 = vunpack.c.l.b16 %v187
    %v827 = vunpack.c.h.b16 %v187
    %v828 = vunpack.c.l.b16 %v188
    %v829 = vunpack.c.h.b16 %v188
    %v830 = vunpack.c.l.b16 %v189
    %v831 = vunpack.c.h.b16 %v189
    %v832 = vunpack.c.l.b16 %v190
    %v833 = vunpack.c.h.b16 %v190
    %v834 = vunpack.c.l.b16 %v191
    %v835 = vunpack.c.h.b16 %v191
    %v836 = vunpack.c.l.b16 %v192
    %v837 = vunpack.c.h.b16 %v192
    %v838 = vunpack.c.l.b16 %v193
    %v839 = vunpack.c.h.b16 %v193
    %v840 = vunpack.c.l.b16 %v194
    %v841 = vunpack.c.h.b16 %v194
    %v842 = vunpack.c.l.b16 %v195
    %v843 = vunpack.c.h.b16 %v195
    %v844 = vunpack.c.l.b16 %v196
    %v845 = vunpack.c.h.b16 %v196
    %v846 = vunpack.c.l.b16 %v197
    %v847 = vunpack.c.h.b16 %v197
    %v848 = vunpack.c.l.b16 %v198
    %v849 = vunpack.c.h.b16 %v198
    %v850 = vunpack.c.l.b16 %v199
    %v851 = vunpack.c.h.b16 %v199
    %v852 = vunpack.c.l.b16 %v200
    %v853 = vunpack.c.h.b16 %v200
    %v854 = vunpack.c.l.b16 %v201
    %v855 = vunpack.c.h.b16 %v201
    %v856 = vunpack.c.l.b16 %v202
    %v857 = vunpack.c.h.b16 %v202
    %v858 = vunpack.c.l.b16 %v203
    %v859 = vunpack.c.h.b16 %v203
    %v860 = vunpack.c.l.b16 %v204
    %v861 = vunpack.c.h.b16 %v204
    %v862 = vunpack.c.l.b16 %v205
    %v863 = vunpack.c.h.b16 %v205
    %v864 = vunpack.c.l.b16 %v206
    %v865 = vunpack.c.h.b16 %v206
    %v866 = vunpack.c.l.b16 %v207
    %v867 = vunpack.c.h.b16 %v207
    %v868 = vunpack.c.l.b16 %v208
    %v869 = vunpack.c.h.b16 %v208
    %v870 = vunpack.c.l.b16 %v209
    %v871 = vunpack.c.h.b16 %v209
    %v872 = vunpack.c.l.b16 %v210
    %v873 = vunpack.c.h.b16 %v210
    %v874 = vunpack.c.l.b16 %v211
    %v875 = vunpack.c.h.b16 %v211
    %v876 = vunpack.c.l.b16 %v212
    %v877 = vunpack.c.h.b16 %v212
    %v878 = vunpack.c.l.b16 %v213
    %v879 = vunpack.c.h.b16 %v213
    %v880 = vunpack.c.l.b16 %v214
    %v881 = vunpack.c.h.b16 %v214
    %v882 = vunpack.c.l.b16 %v215
    %v883 = vunpack.c.h.b16 %v215
    %v884 = vunpack.c.l.b16 %v216
    %v885 = vunpack.c.h.b16 %v216
    %v886 = vunpack.c.l.b16 %v217
    %v887 = vunpack.c.h.b16 %v217
    %v888 = vunpack.c.l.b16 %v218
    %v889 = vunpack.c.h.b16 %v218
    %v890 = vunpack.c.l.b16 %v219
    %v891 = vunpack.c.h.b16 %v219
    %v892 = vunpack.c.l.b16 %v220
    %v893 = vunpack.c.h.b16 %v220
    %v894 = vunpack.c.l.b16 %v221
    %v895 = vunpack.c.h.b16 %v221
    %v896 = vunpack.c.l.b16 %v222
    %v897 = vunpack.c.h.b16 %v222
    %v898 = vunpack.c.l.b16 %v223
    %v899 = vunpack.c.h.b16 %v223
    %v900 = vunpack.c.l.b16 %v224
    %v901 = vunpack.c.h.b16 %v224
    %v902 = vunpack.c.l.b16 %v225
    %v903 = vunpack.c.h.b16 %v225
    %v904 = vunpack.c.l.b16 %v226
    %v905 = vunpack.c.h.b16 %v226
    %v906 = vunpack.c.l.b16 %v227
    %v907 = vunpack.c.h.b16 %v227
    %v908 = vunpack.c.l.b16 %v228
    %v909 = vunpack.c.h.b16 %v228
    %v910 = vunpack.c.l.b16 %v229
    %v911 = vunpack.c.h.b16 %v229
    %v912 = vunpack.c.l.b16 %v230
    %v913 = vunpack.c.h.b16 %v230
    %v914 = vunpack.c.l.b16 %v231
    %v915 = vunpack.c.h.b16 %v231
    %v916 = vunpack.c.l.b16 %v232
    %v917 = vunpack.c.h.b16 %v232
    %v918 = vunpack.c.l.b16 %v233
    %v919 = vunpack.c.h.b16 %v233
    %v920 = vunpack.c.l.b16 %v234
    %v921 = vunpack.c.h.b16 %v234
    %v922 = vunpack.c.l.b16 %v235
    %v923 = vunpack.c.h.b16 %v235
    %v924 = vunpack.c.l.b16 %v236
    %v925 = vunpack.c.h.b16 %v236
    %v926 = vunpack.c.l.b16 %v237
    %v927 = vunpack.c.h.b16 %v237
    %v928 = vunpack.c.l.b16 %v238
    %v929 = vunpack.c.h.b16 %v238
    %v930 = vunpack.c.l.b16 %v239
    %v931 = vunpack.c.h.b16 %v239
    %v932 = vunpack.c.l.b16 %v240
    %v933 = vunpack.c.h.b16 %v240
    %v934 = vunpack.c.l.b16 %v241
    %v935 = vunpack.c.h.b16 %v241
    %v936 = vunpack.c.l.b16 %v242
    %v937 = vunpack.c.h.b16 %v242
    %v938 = vunpack.c.l.b16 %v243
    %v939 = vunpack.c.h.b16 %v243
    %v940 = vunpack.c.l.b16 %v244
    %v941 = vunpack.c.h.b16 %v244
    %v942 = vunpack.c.l.b16 %v245
    %v943 = vunpack.c.h.b16 %v245
    %v944 = vunpack.c.l.b16 %v246
    %v945 = vunpack.c.h.b16 %v246
    %v946 = vunpack.c.l.b16 %v247
    %v947 = vunpack.c.h.b16 %v247
    %v948 = vunpack.c.l.b16 %v248
    %v949 = vunpack.c.h.b16 %v248
    %v950 = vunpack.c.l.b16 %v249
    %v951 = vunpack.c.h.b16 %v249
    %v952 = vunpack.c.l.b16 %v250
    %v953 = vunpack.c.h.b16 %v250
    %v954 = vunpack.c.l.b16 %v251
    %v955 = vunpack.c.h.b16 %v251
    %v956 = vunpack.c.l.b16 %v252
    %v957 = vunpack.c.h.b16 %v252
    %v958 = vunpack.c.l.b16 %v253
    %v959 = vunpack.c.h.b16 %v253
    %v960 = vunpack.c.l.b16 %v254
    %v961 = vunpack.c.h.b16 %v254
    %v962 = vpack.c.b16 %v518, %v514
    %v963 = vpack.c.b16 %v519, %v515
    %v964 = vpack.c.b16 %v520, %v516
    %v965 = vpack.c.b16 %v521, %v517
    %v966 = vpack.c.b16 %v526, %v522
    %v967 = vpack.c.b16 %v527, %v523
    %v968 = vpack.c.b16 %v528, %v524
    %v969 = vpack.c.b16 %v529, %v525
    %v970 = vpack.c.b16 %v534, %v530
    %v971 = vpack.c.b16 %v535, %v531
    %v972 = vpack.c.b16 %v536, %v532
    %v973 = vpack.c.b16 %v537, %v533
    %v974 = vpack.c.b16 %v542, %v538
    %v975 = vpack.c.b16 %v543, %v539
    %v976 = vpack.c.b16 %v544, %v540
    %v977 = vpack.c.b16 %v545, %v541
    %v978 = vpack.c.b16 %v550, %v546
    %v979 = vpack.c.b16 %v551, %v547
    %v980 = vpack.c.b16 %v552, %v548
    %v981 = vpack.c.b16 %v553, %v549
    %v982 = vpack.c.b16 %v558, %v554
    %v983 = vpack.c.b16 %v559, %v555
    %v984 = vpack.c.b16 %v560, %v556
    %v985 = vpack.c.b16 %v561, %v557
    %v986 = vpack.c.b16 %v566, %v562
    %v987 = vpack.c.b16 %v567, %v563
    %v988 = vpack.c.b16 %v568, %v564
    %v989 = vpack.c.b16 %v569, %v565
    %v990 = vpack.c.b16 %v574, %v570
    %v991 = vpack.c.b16 %v575, %v571
    %v992 = vpack.c.b16 %v576, %v572
    %v993 = vpack.c.b16 %v577, %v573
    %v994 = vpack.c.b16 %v582, %v578
    %v995 = vpack.c.b16 %v583, %v579
    %v996 = vpack.c.b16 %v584, %v580
    %v997 = vpack.c.b16 %v585, %v581
    %v998 = vpack.c.b16 %v590, %v586
    %v999 = vpack.c.b16 %v591, %v587
    %v1000 = vpack.c.b16 %v592, %v588
    %v1001 = vpack.c.b16 %v593, %v589
    %v1002 = vpack.c.b16 %v598, %v594
    %v1003 = vpack.c.b16 %v599, %v595
    %v1004 = vpack.c.b16 %v600, %v596
    %v1005 = vpack.c.b16 %v601, %v597
    %v1006 = vpack.c.b16 %v606, %v602
    %v1007 = vpack.c.b16 %v607, %v603
    %v1008 = vpack.c.b16 %v608, %v604
    %v1009 = vpack.c.b16 %v609, %v605
    %v1010 = vpack.c.b16 %v614, %v610
    %v1011 = vpack.c.b16 %v615, %v611
    %v1012 = vpack.c.b16 %v616, %v612
    %v1013 = vpack.c.b16 %v617, %v613
    %v1014 = vpack.c.b16 %v622, %v618
    %v1015 = vpack.c.b16 %v623, %v619
    %v1016 = vpack.c.b16 %v624, %v620
    %v1017 = vpack.c.b16 %v625, %v621
    %v1018 = vpack.c.b16 %v630, %v626
    %v1019 = vpack.c.b16 %v631, %v627
    %v1020 = vpack.c.b16 %v632, %v628
    %v1021 = vpack.c.b16 %v633, %v629
    %v1022 = vpack.c.b16 %v638, %v634
    %v1023 = vpack.c.b16 %v639, %v635
    %v1024 = vpack.c.b16 %v640, %v636
    %v1025 = vpack.c.b16 %v641, %v637
    %v1026 = vpack.c.b16 %v646, %v642
    %v1027 = vpack.c.b16 %v647, %v643
    %v1028 = vpack.c.b16 %v648, %v644
    %v1029 = vpack.c.b16 %v649, %v645
    %v1030 = vpack.c.b16 %v654, %v650
    %v1031 = vpack.c.b16 %v655, %v651
    %v1032 = vpack.c.b16 %v656, %v652
    %v1033 = vpack.c.b16 %v657, %v653
    %v1034 = vpack.c.b16 %v662, %v658
    %v1035 = vpack.c.b16 %v663, %v659
    %v1036 = vpack.c.b16 %v664, %v660
    %v1037 = vpack.c.b16 %v665, %v661
    %v1038 = vpack.c.b16 %v670, %v666
    %v1039 = vpack.c.b16 %v671, %v667
    %v1040 = vpack.c.b16 %v672, %v668
    %v1041 = vpack.c.b16 %v673, %v669
    %v1042 = vpack.c.b16 %v678, %v674
    %v1043 = vpack.c.b16 %v679, %v675
    %v1044 = vpack.c.b16 %v680, %v676
    %v1045 = vpack.c.b16 %v681, %v677
    %v1046 = vpack.c.b16 %v686, %v682
    %v1047 = vpack.c.b16 %v687, %v683
    %v1048 = vpack.c.b16 %v688, %v684
    %v1049 = vpack.c.b16 %v689, %v685
    %v1050 = vpack.c.b16 %v694, %v690
    %v1051 = vpack.c.b16 %v695, %v691
    %v1052 = vpack.c.b16 %v696, %v692
    %v1053 = vpack.c.b16 %v697, %v693
    %v1054 = vpack.c.b16 %v702, %v698
    %v1055 = vpack.c.b16 %v703, %v699
    %v1056 = vpack.c.b16 %v704, %v700
    %v1057 = vpack.c.b16 %v705, %v701
    %v1058 = vpack.c.b16 %v710, %v706
    %v1059 = vpack.c.b16 %v711, %v707
    %v1060 = vpack.c.b16 %v712, %v708
    %v1061 = vpack.c.b16 %v713, %v709
    %v1062 = vpack.c.b16 %v718, %v714
    %v1063 = vpack.c.b16 %v719, %v715
    %v1064 = vpack.c.b16 %v720, %v716
    %v1065 = vpack.c.b16 %v721, %v717
    %v1066 = vpack.c.b16 %v726, %v722
    %v1067 = vpack.c.b16 %v727, %v723
    %v1068 = vpack.c.b16 %v728, %v724
    %v1069 = vpack.c.b16 %v729, %v725
    %v1070 = vpack.c.b16 %v734, %v730
    %v1071 = vpack.c.b16 %v735, %v731
    %v1072 = vpack.c.b16 %v736, %v732
    %v1073 = vpack.c.b16 %v737, %v733
    %v1074 = vpack.c.b16 %v742, %v738
    %v1075 = vpack.c.b16 %v743, %v739
    %v1076 = vpack.c.b16 %v744, %v740
    %v1077 = vpack.c.b16 %v745, %v741
    %v1078 = vpack.c.b16 %v750, %v746
    %v1079 = vpack.c.b16 %v751, %v747
    %v1080 = vpack.c.b16 %v752, %v748
    %v1081 = vpack.c.b16 %v753, %v749
    %v1082 = vpack.c.b16 %v758, %v754
    %v1083 = vpack.c.b16 %v759, %v755
    %v1084 = vpack.c.b16 %v760, %v756
    %v1085 = vpack.c.b16 %v761, %v757
    %v1086 = vpack.c.b16 %v766, %v762
    %v1087 = vpack.c.b16 %v767, %v763
    %v1088 = vpack.c.b16 %v768, %v764
    %v1089 = vpack.c.b16 %v769, %v765
    %v1090 = vpack.c.b16 %v774, %v770
    %v1091 = vpack.c.b16 %v775, %v771
    %v1092 = vpack.c.b16 %v776, %v772
    %v1093 = vpack.c.b16 %v777, %v773
    %v1094 = vpack.c.b16 %v782, %v778
    %v1095 = vpack.c.b16 %v783, %v779
    %v1096 = vpack.c.b16 %v784, %v780
    %v1097 = vpack.c.b16 %v785, %v781
    %v1098 = vpack.c.b16 %v790, %v786
    %v1099 = vpack.c.b16 %v791, %v787
    %v1100 = vpack.c.b16 %v792, %v788
    %v1101 = vpack.c.b16 %v793, %v789
    %v1102 = vpack.c.b16 %v798, %v794
    %v1103 = vpack.c.b16 %v799, %v795
    %v1104 = vpack.c.b16 %v800, %v796
    %v1105 = vpack.c.b16 %v801, %v797
    %v1106 = vpack.c.b16 %v806, %v802
    %v1107 = vpack.c.b16 %v807, %v803
    %v1108 = vpack.c.b16 %v808, %v804
    %v1109 = vpack.c.b16 %v809, %v805
    %v1110 = vpack.c.b16 %v814, %v810
    %v1111 = vpack.c.b16 %v815, %v811
    %v1112 = vpack.c.b16 %v816, %v812
    %v1113 = vpack.c.b16 %v817, %v813
    %v1114 = vpack.c.b16 %v822, %v818
    %v1115 = vpack.c.b16 %v823, %v819
    %v1116 = vpack.c.b16 %v824, %v820
    %v1117 = vpack.c.b16 %v825, %v821
    %v1118 = vpack.c.b16 %v830, %v826
    %v1119 = vpack.c.b16 %v831, %v827
    %v1120 = vpack.c.b16 %v832, %v828
    %v1121 = vpack.c.b16 %v833, %v829
    %v1122 = vpack.c.b16 %v838, %v834
    %v1123 = vpack.c.b16 %v839, %v835
    %v1124 = vpack.c.b16 %v840, %v836
    %v1125 = vpack.c.b16 %v841, %v837
    %v1126 = vpack.c.b16 %v846, %v842
    %v1127 = vpack.c.b16 %v847, %v843
    %v1128 = vpack.c.b16 %v848, %v844
    %v1129 = vpack.c.b16 %v849, %v845
    %v1130 = vpack.c.b16 %v854, %v850
    %v1131 = vpack.c.b16 %v855, %v851
    %v1132 = vpack.c.b16 %v856, %v852
    %v1133 = vpack.c.b16 %v857, %v853
    %v1134 = vpack.c.b16 %v862, %v858
    %v1135 = vpack.c.b16 %v863, %v859
    %v1136 = vpack.c.b16 %v864, %v860
    %v1137 = vpack.c.b16 %v865, %v861
    %v1138 = vpack.c.b16 %v870, %v866
    %v1139 = vpack.c.b16 %v871, %v867
    %v1140 = vpack.c.b16 %v872, %v868
    %v1141 = vpack.c.b16 %v873, %v869
    %v1142 = vpack.c.b16 %v878, %v874
    %v1143 = vpack.c.b16 %v879, %v875
    %v1144 = vpack.c.b16 %v880, %v876
    %v1145 = vpack.c.b16 %v881, %v877
    %v1146 = vpack.c.b16 %v886, %v882
    %v1147 = vpack.c.b16 %v887, %v883
    %v1148 = vpack.c.b16 %v888, %v884
    %v1149 = vpack.c.b16 %v889, %v885
    %v1150 = vpack.c.b16 %v894, %v890
    %v1151 = vpack.c.b16 %v895, %v891
    %v1152 = vpack.c.b16 %v896, %v892
    %v1153 = vpack.c.b16 %v897, %v893
    %v1154 = vpack.c.b16 %v902, %v898
    %v1155 = vpack.c.b16 %v903, %v899
    %v1156 = vpack.c.b16 %v904, %v900
    %v1157 = vpack.c.b16 %v905, %v901
    %v1158 = vpack.c.b16 %v910, %v906
    %v1159 = vpack.c.b16 %v911, %v907
    %v1160 = vpack.c.b16 %v912, %v908
    %v1161 = vpack.c.b16 %v913, %v909
    %v1162 = vpack.c.b16 %v918, %v914
    %v1163 = vpack.c.b16 %v919, %v915
    %v1164 = vpack.c.b16 %v920, %v916
    %v1165 = vpack.c.b16 %v921, %v917
    %v1166 = vpack.c.b16 %v926, %v922
    %v1167 = vpack.c.b16 %v927, %v923
    %v1168 = vpack.c.b16 %v928, %v924
    %v1169 = vpack.c.b16 %v929, %v925
    %v1170 = vpack.c.b16 %v934, %v930
    %v1171 = vpack.c.b16 %v935, %v931
    %v1172 = vpack.c.b16 %v936, %v932
    %v1173 = vpack.c.b16 %v937, %v933
    %v1174 = vpack.c.b16 %v942, %v938
    %v1175 = vpack.c.b16 %v943, %v939
    %v1176 = vpack.c.b16 %v944, %v940
    %v1177 = vpack.c.b16 %v945, %v941
    %v1178 = vpack.c.b16 %v950, %v946
    %v1179 = vpack.c.b16 %v951, %v947
    %v1180 = vpack.c.b16 %v952, %v948
    %v1181 = vpack.c.b16 %v953, %v949
    %v1182 = vpack.c.b16 %v958, %v954
    %v1183 = vpack.c.b16 %v959, %v955
    %v1184 = vpack.c.b16 %v960, %v956
    %v1185 = vpack.c.b16 %v961, %v957
    %1410 = vmatpush.bf16.msra.mxu0 %v990
    %1411 = vmatpush.bf16.msra.mxu0 %v986
    %1412 = vmatpush.bf16.msra.mxu0 %v982
    %1413 = vmatpush.bf16.msra.mxu0 %v978
    %1414 = vmatpush.bf16.msra.mxu0 %v974
    %1415 = vmatpush.bf16.msra.mxu0 %v970
    %1416 = vmatpush.bf16.msra.mxu0 %v966
    %1417 = vmatpush.bf16.msra.mxu0 %v962
    %1418 = vmatmul.bf16.gmra.mxu0 %v276
    %v1419 = vpop.f32.mrf.mxu0
    %v1420 = vadd.f32 %v257, %v1419
    %v1421 = vpop.f32.mrf.mxu0
    %1422 = vdwg.mxu0
    %1423 = vmatpush.bf16.msra.mxu0 %v1022
    %1424 = vmatpush.bf16.msra.mxu0 %v1018
    %1425 = vmatpush.bf16.msra.mxu0 %v1014
    %1426 = vmatpush.bf16.msra.mxu0 %v1010
    %1427 = vmatpush.bf16.msra.mxu0 %v1006
    %1428 = vmatpush.bf16.msra.mxu0 %v1002
    %1429 = vmatpush.bf16.msra.mxu0 %v998
    %1430 = vmatpush.bf16.msra.mxu0 %v994
    %1431 = vmatmul.bf16.gmra.mxu0 %v277
    %v1432 = vpop.f32.mrf.mxu0
    %v1433 = vadd.f32 %v1420, %v1432
    %v1434 = vpop.f32.mrf.mxu0
    %1435 = vdwg.mxu0
    %1436 = vmatpush.bf16.msra.mxu0 %v1054
    %1437 = vmatpush.bf16.msra.mxu0 %v1050
    %1438 = vmatpush.bf16.msra.mxu0 %v1046
    %1439 = vmatpush.bf16.msra.mxu0 %v1042
    %1440 = vmatpush.bf16.msra.mxu0 %v1038
    %1441 = vmatpush.bf16.msra.mxu0 %v1034
    %1442 = vmatpush.bf16.msra.mxu0 %v1030
    %1443 = vmatpush.bf16.msra.mxu0 %v1026
    %1444 = vmatmul.bf16.gmra.mxu0 %v278
    %v1445 = vpop.f32.mrf.mxu0
    %v1446 = vadd.f32 %v1433, %v1445
    %v1447 = vpop.f32.mrf.mxu0
    %1448 = vdwg.mxu0
    %1449 = vmatpush.bf16.msra.mxu0 %v1086
    %1450 = vmatpush.bf16.msra.mxu0 %v1082
    %1451 = vmatpush.bf16.msra.mxu0 %v1078
    %1452 = vmatpush.bf16.msra.mxu0 %v1074
    %1453 = vmatpush.bf16.msra.mxu0 %v1070
    %1454 = vmatpush.bf16.msra.mxu0 %v1066
    %1455 = vmatpush.bf16.msra.mxu0 %v1062
    %1456 = vmatpush.bf16.msra.mxu0 %v1058
    %1457 = vmatmul.bf16.gmra.mxu0 %v279
    %v1458 = vpop.f32.mrf.mxu0
    %v1459 = vadd.f32 %v1446, %v1458
    %v1460 = vpop.f32.mrf.mxu0
    %1461 = vdwg.mxu0
    %1462 = vmatpush.bf16.msra.mxu0 %v1118
    %1463 = vmatpush.bf16.msra.mxu0 %v1114
    %1464 = vmatpush.bf16.msra.mxu0 %v1110
    %1465 = vmatpush.bf16.msra.mxu0 %v1106
    %1466 = vmatpush.bf16.msra.mxu0 %v1102
    %1467 = vmatpush.bf16.msra.mxu0 %v1098
    %1468 = vmatpush.bf16.msra.mxu0 %v1094
    %1469 = vmatpush.bf16.msra.mxu0 %v1090
    %1470 = vmatmul.bf16.gmra.mxu0 %v280
    %v1471 = vpop.f32.mrf.mxu0
    %v1472 = vadd.f32 %v1459, %v1471
    %v1473 = vpop.f32.mrf.mxu0
    %1474 = vdwg.mxu0
    %1475 = vmatpush.bf16.msra.mxu0 %v1150
    %1476 = vmatpush.bf16.msra.mxu0 %v1146
    %1477 = vmatpush.bf16.msra.mxu0 %v1142
    %1478 = vmatpush.bf16.msra.mxu0 %v1138
    %1479 = vmatpush.bf16.msra.mxu0 %v1134
    %1480 = vmatpush.bf16.msra.mxu0 %v1130
    %1481 = vmatpush.bf16.msra.mxu0 %v1126
    %1482 = vmatpush.bf16.msra.mxu0 %v1122
    %1483 = vmatmul.bf16.gmra.mxu0 %v281
    %v1484 = vpop.f32.mrf.mxu0
    %v1485 = vadd.f32 %v1472, %v1484
    %v1486 = vpop.f32.mrf.mxu0
    %1487 = vdwg.mxu0
    %1488 = vmatpush.bf16.msra.mxu0 %v1182
    %1489 = vmatpush.bf16.msra.mxu0 %v1178
    %1490 = vmatpush.bf16.msra.mxu0 %v1174
    %1491 = vmatpush.bf16.msra.mxu0 %v1170
    %1492 = vmatpush.bf16.msra.mxu0 %v1166
    %1493 = vmatpush.bf16.msra.mxu0 %v1162
    %1494 = vmatpush.bf16.msra.mxu0 %v1158
    %1495 = vmatpush.bf16.msra.mxu0 %v1154
    %1496 = vmatmul.bf16.gmra.mxu0 %v282
    %v1497 = vpop.f32.mrf.mxu0
    %v1498 = vadd.f32 %v1485, %v1497
    %v1499 = vpop.f32.mrf.mxu0
    %1500 = vdwg.mxu0
    %1501 = vmatpush.bf16.msra.mxu0 %v991
    %1502 = vmatpush.bf16.msra.mxu0 %v987
    %1503 = vmatpush.bf16.msra.mxu0 %v983
    %1504 = vmatpush.bf16.msra.mxu0 %v979
    %1505 = vmatpush.bf16.msra.mxu0 %v975
    %1506 = vmatpush.bf16.msra.mxu0 %v971
    %1507 = vmatpush.bf16.msra.mxu0 %v967
    %1508 = vmatpush.bf16.msra.mxu0 %v963
    %1509 = vmatmul.bf16.gmra.mxu0 %v276
    %v1510 = vpop.f32.mrf.mxu0
    %v1511 = vadd.f32 %v258, %v1510
    %v1512 = vpop.f32.mrf.mxu0
    %1513 = vdwg.mxu0
    %1514 = vmatpush.bf16.msra.mxu0 %v1023
    %1515 = vmatpush.bf16.msra.mxu0 %v1019
    %1516 = vmatpush.bf16.msra.mxu0 %v1015
    %1517 = vmatpush.bf16.msra.mxu0 %v1011
    %1518 = vmatpush.bf16.msra.mxu0 %v1007
    %1519 = vmatpush.bf16.msra.mxu0 %v1003
    %1520 = vmatpush.bf16.msra.mxu0 %v999
    %1521 = vmatpush.bf16.msra.mxu0 %v995
    %1522 = vmatmul.bf16.gmra.mxu0 %v277
    %v1523 = vpop.f32.mrf.mxu0
    %v1524 = vadd.f32 %v1511, %v1523
    %v1525 = vpop.f32.mrf.mxu0
    %1526 = vdwg.mxu0
    %1527 = vmatpush.bf16.msra.mxu0 %v1055
    %1528 = vmatpush.bf16.msra.mxu0 %v1051
    %1529 = vmatpush.bf16.msra.mxu0 %v1047
    %1530 = vmatpush.bf16.msra.mxu0 %v1043
    %1531 = vmatpush.bf16.msra.mxu0 %v1039
    %1532 = vmatpush.bf16.msra.mxu0 %v1035
    %1533 = vmatpush.bf16.msra.mxu0 %v1031
    %1534 = vmatpush.bf16.msra.mxu0 %v1027
    %1535 = vmatmul.bf16.gmra.mxu0 %v278
    %v1536 = vpop.f32.mrf.mxu0
    %v1537 = vadd.f32 %v1524, %v1536
    %v1538 = vpop.f32.mrf.mxu0
    %1539 = vdwg.mxu0
    %1540 = vmatpush.bf16.msra.mxu0 %v1087
    %1541 = vmatpush.bf16.msra.mxu0 %v1083
    %1542 = vmatpush.bf16.msra.mxu0 %v1079
    %1543 = vmatpush.bf16.msra.mxu0 %v1075
    %1544 = vmatpush.bf16.msra.mxu0 %v1071
    %1545 = vmatpush.bf16.msra.mxu0 %v1067
    %1546 = vmatpush.bf16.msra.mxu0 %v1063
    %1547 = vmatpush.bf16.msra.mxu0 %v1059
    %1548 = vmatmul.bf16.gmra.mxu0 %v279
    %v1549 = vpop.f32.mrf.mxu0
    %v1550 = vadd.f32 %v1537, %v1549
    %v1551 = vpop.f32.mrf.mxu0
    %1552 = vdwg.mxu0
    %1553 = vmatpush.bf16.msra.mxu0 %v1119
    %1554 = vmatpush.bf16.msra.mxu0 %v1115
    %1555 = vmatpush.bf16.msra.mxu0 %v1111
    %1556 = vmatpush.bf16.msra.mxu0 %v1107
    %1557 = vmatpush.bf16.msra.mxu0 %v1103
    %1558 = vmatpush.bf16.msra.mxu0 %v1099
    %1559 = vmatpush.bf16.msra.mxu0 %v1095
    %1560 = vmatpush.bf16.msra.mxu0 %v1091
    %1561 = vmatmul.bf16.gmra.mxu0 %v280
    %v1562 = vpop.f32.mrf.mxu0
    %v1563 = vadd.f32 %v1550, %v1562
    %v1564 = vpop.f32.mrf.mxu0
    %1565 = vdwg.mxu0
    %1566 = vmatpush.bf16.msra.mxu0 %v1151
    %1567 = vmatpush.bf16.msra.mxu0 %v1147
    %1568 = vmatpush.bf16.msra.mxu0 %v1143
    %1569 = vmatpush.bf16.msra.mxu0 %v1139
    %1570 = vmatpush.bf16.msra.mxu0 %v1135
    %1571 = vmatpush.bf16.msra.mxu0 %v1131
    %1572 = vmatpush.bf16.msra.mxu0 %v1127
    %1573 = vmatpush.bf16.msra.mxu0 %v1123
    %1574 = vmatmul.bf16.gmra.mxu0 %v281
    %v1575 = vpop.f32.mrf.mxu0
    %v1576 = vadd.f32 %v1563, %v1575
    %v1577 = vpop.f32.mrf.mxu0
    %1578 = vdwg.mxu0
    %1579 = vmatpush.bf16.msra.mxu0 %v1183
    %1580 = vmatpush.bf16.msra.mxu0 %v1179
    %1581 = vmatpush.bf16.msra.mxu0 %v1175
    %1582 = vmatpush.bf16.msra.mxu0 %v1171
    %1583 = vmatpush.bf16.msra.mxu0 %v1167
    %1584 = vmatpush.bf16.msra.mxu0 %v1163
    %1585 = vmatpush.bf16.msra.mxu0 %v1159
    %1586 = vmatpush.bf16.msra.mxu0 %v1155
    %1587 = vmatmul.bf16.gmra.mxu0 %v282
    %v1588 = vpop.f32.mrf.mxu0
    %v1589 = vadd.f32 %v1576, %v1588
    %v1590 = vpop.f32.mrf.mxu0
    %1591 = vdwg.mxu0
    %1592 = vmatpush.bf16.msra.mxu0 %v992
    %1593 = vmatpush.bf16.msra.mxu0 %v988
    %1594 = vmatpush.bf16.msra.mxu0 %v984
    %1595 = vmatpush.bf16.msra.mxu0 %v980
    %1596 = vmatpush.bf16.msra.mxu0 %v976
    %1597 = vmatpush.bf16.msra.mxu0 %v972
    %1598 = vmatpush.bf16.msra.mxu0 %v968
    %1599 = vmatpush.bf16.msra.mxu0 %v964
    %1600 = vmatmul.bf16.gmra.mxu0 %v276
    %v1601 = vpop.f32.mrf.mxu0
    %v1602 = vadd.f32 %v259, %v1601
    %v1603 = vpop.f32.mrf.mxu0
    %1604 = vdwg.mxu0
    %1605 = vmatpush.bf16.msra.mxu0 %v1024
    %1606 = vmatpush.bf16.msra.mxu0 %v1020
    %1607 = vmatpush.bf16.msra.mxu0 %v1016
    %1608 = vmatpush.bf16.msra.mxu0 %v1012
    %1609 = vmatpush.bf16.msra.mxu0 %v1008
    %1610 = vmatpush.bf16.msra.mxu0 %v1004
    %1611 = vmatpush.bf16.msra.mxu0 %v1000
    %1612 = vmatpush.bf16.msra.mxu0 %v996
    %1613 = vmatmul.bf16.gmra.mxu0 %v277
    %v1614 = vpop.f32.mrf.mxu0
    %v1615 = vadd.f32 %v1602, %v1614
    %v1616 = vpop.f32.mrf.mxu0
    %1617 = vdwg.mxu0
    %1618 = vmatpush.bf16.msra.mxu0 %v1056
    %1619 = vmatpush.bf16.msra.mxu0 %v1052
    %1620 = vmatpush.bf16.msra.mxu0 %v1048
    %1621 = vmatpush.bf16.msra.mxu0 %v1044
    %1622 = vmatpush.bf16.msra.mxu0 %v1040
    %1623 = vmatpush.bf16.msra.mxu0 %v1036
    %1624 = vmatpush.bf16.msra.mxu0 %v1032
    %1625 = vmatpush.bf16.msra.mxu0 %v1028
    %1626 = vmatmul.bf16.gmra.mxu0 %v278
    %v1627 = vpop.f32.mrf.mxu0
    %v1628 = vadd.f32 %v1615, %v1627
    %v1629 = vpop.f32.mrf.mxu0
    %1630 = vdwg.mxu0
    %1631 = vmatpush.bf16.msra.mxu0 %v1088
    %1632 = vmatpush.bf16.msra.mxu0 %v1084
    %1633 = vmatpush.bf16.msra.mxu0 %v1080
    %1634 = vmatpush.bf16.msra.mxu0 %v1076
    %1635 = vmatpush.bf16.msra.mxu0 %v1072
    %1636 = vmatpush.bf16.msra.mxu0 %v1068
    %1637 = vmatpush.bf16.msra.mxu0 %v1064
    %1638 = vmatpush.bf16.msra.mxu0 %v1060
    %1639 = vmatmul.bf16.gmra.mxu0 %v279
    %v1640 = vpop.f32.mrf.mxu0
    %v1641 = vadd.f32 %v1628, %v1640
    %v1642 = vpop.f32.mrf.mxu0
    %1643 = vdwg.mxu0
    %1644 = vmatpush.bf16.msra.mxu0 %v1120
    %1645 = vmatpush.bf16.msra.mxu0 %v1116
    %1646 = vmatpush.bf16.msra.mxu0 %v1112
    %1647 = vmatpush.bf16.msra.mxu0 %v1108
    %1648 = vmatpush.bf16.msra.mxu0 %v1104
    %1649 = vmatpush.bf16.msra.mxu0 %v1100
    %1650 = vmatpush.bf16.msra.mxu0 %v1096
    %1651 = vmatpush.bf16.msra.mxu0 %v1092
    %1652 = vmatmul.bf16.gmra.mxu0 %v280
    %v1653 = vpop.f32.mrf.mxu0
    %v1654 = vadd.f32 %v1641, %v1653
    %v1655 = vpop.f32.mrf.mxu0
    %1656 = vdwg.mxu0
    %1657 = vmatpush.bf16.msra.mxu0 %v1152
    %1658 = vmatpush.bf16.msra.mxu0 %v1148
    %1659 = vmatpush.bf16.msra.mxu0 %v1144
    %1660 = vmatpush.bf16.msra.mxu0 %v1140
    %1661 = vmatpush.bf16.msra.mxu0 %v1136
    %1662 = vmatpush.bf16.msra.mxu0 %v1132
    %1663 = vmatpush.bf16.msra.mxu0 %v1128
    %1664 = vmatpush.bf16.msra.mxu0 %v1124
    %1665 = vmatmul.bf16.gmra.mxu0 %v281
    %v1666 = vpop.f32.mrf.mxu0
    %v1667 = vadd.f32 %v1654, %v1666
    %v1668 = vpop.f32.mrf.mxu0
    %1669 = vdwg.mxu0
    %1670 = vmatpush.bf16.msra.mxu0 %v1184
    %1671 = vmatpush.bf16.msra.mxu0 %v1180
    %1672 = vmatpush.bf16.msra.mxu0 %v1176
    %1673 = vmatpush.bf16.msra.mxu0 %v1172
    %1674 = vmatpush.bf16.msra.mxu0 %v1168
    %1675 = vmatpush.bf16.msra.mxu0 %v1164
    %1676 = vmatpush.bf16.msra.mxu0 %v1160
    %1677 = vmatpush.bf16.msra.mxu0 %v1156
    %1678 = vmatmul.bf16.gmra.mxu0 %v282
    %v1679 = vpop.f32.mrf.mxu0
    %v1680 = vadd.f32 %v1667, %v1679
    %v1681 = vpop.f32.mrf.mxu0
    %1682 = vdwg.mxu0
    %1683 = vmatpush.bf16.msra.mxu0 %v993
    %1684 = vmatpush.bf16.msra.mxu0 %v989
    %1685 = vmatpush.bf16.msra.mxu0 %v985
    %1686 = vmatpush.bf16.msra.mxu0 %v981
    %1687 = vmatpush.bf16.msra.mxu0 %v977
    %1688 = vmatpush.bf16.msra.mxu0 %v973
    %1689 = vmatpush.bf16.msra.mxu0 %v969
    %1690 = vmatpush.bf16.msra.mxu0 %v965
    %1691 = vmatmul.bf16.gmra.mxu0 %v276
    %v1692 = vpop.f32.mrf.mxu0
    %v1693 = vadd.f32 %v260, %v1692
    %v1694 = vpop.f32.mrf.mxu0
    %1695 = vdwg.mxu0
    %1696 = vmatpush.bf16.msra.mxu0 %v1025
    %1697 = vmatpush.bf16.msra.mxu0 %v1021
    %1698 = vmatpush.bf16.msra.mxu0 %v1017
    %1699 = vmatpush.bf16.msra.mxu0 %v1013
    %1700 = vmatpush.bf16.msra.mxu0 %v1009
    %1701 = vmatpush.bf16.msra.mxu0 %v1005
    %1702 = vmatpush.bf16.msra.mxu0 %v1001
    %1703 = vmatpush.bf16.msra.mxu0 %v997
    %1704 = vmatmul.bf16.gmra.mxu0 %v277
    %v1705 = vpop.f32.mrf.mxu0
    %v1706 = vadd.f32 %v1693, %v1705
    %v1707 = vpop.f32.mrf.mxu0
    %1708 = vdwg.mxu0
    %1709 = vmatpush.bf16.msra.mxu0 %v1057
    %1710 = vmatpush.bf16.msra.mxu0 %v1053
    %1711 = vmatpush.bf16.msra.mxu0 %v1049
    %1712 = vmatpush.bf16.msra.mxu0 %v1045
    %1713 = vmatpush.bf16.msra.mxu0 %v1041
    %1714 = vmatpush.bf16.msra.mxu0 %v1037
    %1715 = vmatpush.bf16.msra.mxu0 %v1033
    %1716 = vmatpush.bf16.msra.mxu0 %v1029
    %1717 = vmatmul.bf16.gmra.mxu0 %v278
    %v1718 = vpop.f32.mrf.mxu0
    %v1719 = vadd.f32 %v1706, %v1718
    %v1720 = vpop.f32.mrf.mxu0
    %1721 = vdwg.mxu0
    %1722 = vmatpush.bf16.msra.mxu0 %v1089
    %1723 = vmatpush.bf16.msra.mxu0 %v1085
    %1724 = vmatpush.bf16.msra.mxu0 %v1081
    %1725 = vmatpush.bf16.msra.mxu0 %v1077
    %1726 = vmatpush.bf16.msra.mxu0 %v1073
    %1727 = vmatpush.bf16.msra.mxu0 %v1069
    %1728 = vmatpush.bf16.msra.mxu0 %v1065
    %1729 = vmatpush.bf16.msra.mxu0 %v1061
    %1730 = vmatmul.bf16.gmra.mxu0 %v279
    %v1731 = vpop.f32.mrf.mxu0
    %v1732 = vadd.f32 %v1719, %v1731
    %v1733 = vpop.f32.mrf.mxu0
    %1734 = vdwg.mxu0
    %1735 = vmatpush.bf16.msra.mxu0 %v1121
    %1736 = vmatpush.bf16.msra.mxu0 %v1117
    %1737 = vmatpush.bf16.msra.mxu0 %v1113
    %1738 = vmatpush.bf16.msra.mxu0 %v1109
    %1739 = vmatpush.bf16.msra.mxu0 %v1105
    %1740 = vmatpush.bf16.msra.mxu0 %v1101
    %1741 = vmatpush.bf16.msra.mxu0 %v1097
    %1742 = vmatpush.bf16.msra.mxu0 %v1093
    %1743 = vmatmul.bf16.gmra.mxu0 %v280
    %v1744 = vpop.f32.mrf.mxu0
    %v1745 = vadd.f32 %v1732, %v1744
    %v1746 = vpop.f32.mrf.mxu0
    %1747 = vdwg.mxu0
    %1748 = vmatpush.bf16.msra.mxu0 %v1153
    %1749 = vmatpush.bf16.msra.mxu0 %v1149
    %1750 = vmatpush.bf16.msra.mxu0 %v1145
    %1751 = vmatpush.bf16.msra.mxu0 %v1141
    %1752 = vmatpush.bf16.msra.mxu0 %v1137
    %1753 = vmatpush.bf16.msra.mxu0 %v1133
    %1754 = vmatpush.bf16.msra.mxu0 %v1129
    %1755 = vmatpush.bf16.msra.mxu0 %v1125
    %1756 = vmatmul.bf16.gmra.mxu0 %v281
    %v1757 = vpop.f32.mrf.mxu0
    %v1758 = vadd.f32 %v1745, %v1757
    %v1759 = vpop.f32.mrf.mxu0
    %1760 = vdwg.mxu0
    %1761 = vmatpush.bf16.msra.mxu0 %v1185
    %1762 = vmatpush.bf16.msra.mxu0 %v1181
    %1763 = vmatpush.bf16.msra.mxu0 %v1177
    %1764 = vmatpush.bf16.msra.mxu0 %v1173
    %1765 = vmatpush.bf16.msra.mxu0 %v1169
    %1766 = vmatpush.bf16.msra.mxu0 %v1165
    %1767 = vmatpush.bf16.msra.mxu0 %v1161
    %1768 = vmatpush.bf16.msra.mxu0 %v1157
    %1769 = vmatmul.bf16.gmra.mxu0 %v282
    %v1770 = vpop.f32.mrf.mxu0
    %v1771 = vadd.f32 %v1758, %v1770
    %v1772 = vpop.f32.mrf.mxu0
    %1773 = vdwg.mxu0
    %v1774 = vmax.f32 %v1498, 0.0
    %v1775 = vmax.f32 %v1589, 0.0
    %v1776 = vmax.f32 %v1680, 0.0
    %v1777 = vmax.f32 %v1771, 0.0
    %v1778 = vpack.c.bf16 %v1774, %v1774
    %v1779 = vpack.c.bf16 %v1775, %v1775
    %v1780 = vpack.c.bf16 %v1776, %v1776
    %v1781 = vpack.c.bf16 %v1777, %v1777
    %v1782 = vld [vmem:[%s3] sm:$0xff]
    %v1783 = vld [vmem:[%s3 + $0x8] sm:$0xff]
    %v1784 = vld [vmem:[%s3 + $0x10] sm:$0xff]
    %v1785 = vld [vmem:[%s3 + $0x18] sm:$0xff]
    %v1786 = vld [vmem:[%s3 + $0x20] sm:$0xff]
    %v1787 = vld [vmem:[%s3 + $0x28] sm:$0xff]
    %v1788 = vld [vmem:[%s3 + $0x30] sm:$0xff]
    %v1789 = vld [vmem:[%s3 + $0x38] sm:$0xff]
    %v1790 = vld [vmem:[%s3 + $0x40] sm:$0xff]
    %v1791 = vld [vmem:[%s3 + $0x48] sm:$0xff]
    %v1792 = vld [vmem:[%s3 + $0x50] sm:$0xff]
    %v1793 = vld [vmem:[%s3 + $0x58] sm:$0xff]
    %v1794 = vld [vmem:[%s3 + $0x60] sm:$0xff]
    %v1795 = vld [vmem:[%s3 + $0x68] sm:$0xff]
    %v1796 = vld [vmem:[%s3 + $0x70] sm:$0xff]
    %v1797 = vld [vmem:[%s3 + $0x78] sm:$0xff]
    %v1798 = vld [vmem:[%s3 + $0x80] sm:$0xff]
    %v1799 = vld [vmem:[%s3 + $0x88] sm:$0xff]
    %v1800 = vld [vmem:[%s3 + $0x90] sm:$0xff]
    %v1801 = vld [vmem:[%s3 + $0x98] sm:$0xff]
    %v1802 = vld [vmem:[%s3 + $0xa0] sm:$0xff]
    %v1803 = vld [vmem:[%s3 + $0xa8] sm:$0xff]
    %v1804 = vld [vmem:[%s3 + $0xb0] sm:$0xff]
    %v1805 = vld [vmem:[%s3 + $0xb8] sm:$0xff]
    %v1806 = vld [vmem:[%s3 + $0xc0] sm:$0xff]
    %v1807 = vld [vmem:[%s3 + $0xc8] sm:$0xff]
    %v1808 = vld [vmem:[%s3 + $0xd0] sm:$0xff]
    %v1809 = vld [vmem:[%s3 + $0xd8] sm:$0xff]
    %v1810 = vld [vmem:[%s3 + $0xe0] sm:$0xff]
    %v1811 = vld [vmem:[%s3 + $0xe8] sm:$0xff]
    %v1812 = vld [vmem:[%s3 + $0xf0] sm:$0xff]
    %v1813 = vld [vmem:[%s3 + $0xf8] sm:$0xff]
    %v1814 = vld [vmem:[%s3 + $0x100] sm:$0xff]
    %v1815 = vld [vmem:[%s3 + $0x108] sm:$0xff]
    %v1816 = vld [vmem:[%s3 + $0x110] sm:$0xff]
    %v1817 = vld [vmem:[%s3 + $0x118] sm:$0xff]
    %v1818 = vld [vmem:[%s3 + $0x120] sm:$0xff]
    %v1819 = vld [vmem:[%s3 + $0x128] sm:$0xff]
    %v1820 = vld [vmem:[%s3 + $0x130] sm:$0xff]
    %v1821 = vld [vmem:[%s3 + $0x138] sm:$0xff]
    %v1822 = vld [vmem:[%s3 + $0x140] sm:$0xff]
    %v1823 = vld [vmem:[%s3 + $0x148] sm:$0xff]
    %v1824 = vld [vmem:[%s3 + $0x150] sm:$0xff]
    %v1825 = vld [vmem:[%s3 + $0x158] sm:$0xff]
    %v1826 = vld [vmem:[%s3 + $0x160] sm:$0xff]
    %v1827 = vld [vmem:[%s3 + $0x168] sm:$0xff]
    %v1828 = vld [vmem:[%s3 + $0x170] sm:$0xff]
    %v1829 = vld [vmem:[%s3 + $0x178] sm:$0xff]
    %v1830 = vld [vmem:[%s3 + $0x180] sm:$0xff]
    %v1831 = vld [vmem:[%s3 + $0x188] sm:$0xff]
    %v1832 = vld [vmem:[%s3 + $0x190] sm:$0xff]
    %v1833 = vld [vmem:[%s3 + $0x198] sm:$0xff]
    %v1834 = vld [vmem:[%s3 + $0x1a0] sm:$0xff]
    %v1835 = vld [vmem:[%s3 + $0x1a8] sm:$0xff]
    %v1836 = vld [vmem:[%s3 + $0x1b0] sm:$0xff]
    %v1837 = vld [vmem:[%s3 + $0x1b8] sm:$0xff]
    %v1838 = vld [vmem:[%s3 + $0x1c0] sm:$0xff]
    %v1839 = vld [vmem:[%s3 + $0x1c8] sm:$0xff]
    %v1840 = vld [vmem:[%s3 + $0x1d0] sm:$0xff]
    %v1841 = vld [vmem:[%s3 + $0x1d8] sm:$0xff]
    %v1842 = vld [vmem:[%s3 + $0x1e0] sm:$0xff]
    %v1843 = vld [vmem:[%s3 + $0x1e8] sm:$0xff]
    %v1844 = vld [vmem:[%s3 + $0x1f0] sm:$0xff]
    %v1845 = vld [vmem:[%s3 + $0x1f8] sm:$0xff]
    %v1846 = vld [vmem:[%s3 + $0x200] sm:$0xff]
    %v1847 = vld [vmem:[%s3 + $0x208] sm:$0xff]
    %v1848 = vld [vmem:[%s3 + $0x210] sm:$0xff]
    %v1849 = vld [vmem:[%s3 + $0x218] sm:$0xff]
    %v1850 = vld [vmem:[%s3 + $0x220] sm:$0xff]
    %v1851 = vld [vmem:[%s3 + $0x228] sm:$0xff]
    %v1852 = vld [vmem:[%s3 + $0x230] sm:$0xff]
    %v1853 = vld [vmem:[%s3 + $0x238] sm:$0xff]
    %v1854 = vld [vmem:[%s3 + $0x240] sm:$0xff]
    %v1855 = vld [vmem:[%s3 + $0x248] sm:$0xff]
    %v1856 = vld [vmem:[%s3 + $0x250] sm:$0xff]
    %v1857 = vld [vmem:[%s3 + $0x258] sm:$0xff]
    %v1858 = vld [vmem:[%s3 + $0x260] sm:$0xff]
    %v1859 = vld [vmem:[%s3 + $0x268] sm:$0xff]
    %v1860 = vld [vmem:[%s3 + $0x270] sm:$0xff]
    %v1861 = vld [vmem:[%s3 + $0x278] sm:$0xff]
    %v1862 = vld [vmem:[%s3 + $0x280] sm:$0xff]
    %v1863 = vld [vmem:[%s3 + $0x288] sm:$0xff]
    %v1864 = vld [vmem:[%s3 + $0x290] sm:$0xff]
    %v1865 = vld [vmem:[%s3 + $0x298] sm:$0xff]
    %v1866 = vld [vmem:[%s3 + $0x2a0] sm:$0xff]
    %v1867 = vld [vmem:[%s3 + $0x2a8] sm:$0xff]
    %v1868 = vld [vmem:[%s3 + $0x2b0] sm:$0xff]
    %v1869 = vld [vmem:[%s3 + $0x2b8] sm:$0xff]
    %v1870 = vld [vmem:[%s3 + $0x2c0] sm:$0xff]
    %v1871 = vld [vmem:[%s3 + $0x2c8] sm:$0xff]
    %v1872 = vld [vmem:[%s3 + $0x2d0] sm:$0xff]
    %v1873 = vld [vmem:[%s3 + $0x2d8] sm:$0xff]
    %v1874 = vld [vmem:[%s3 + $0x2e0] sm:$0xff]
    %v1875 = vld [vmem:[%s3 + $0x2e8] sm:$0xff]
    %v1876 = vld [vmem:[%s3 + $0x2f0] sm:$0xff]
    %v1877 = vld [vmem:[%s3 + $0x2f8] sm:$0xff]
    %v1878 = vld [vmem:[%s3 + $0x300] sm:$0xff]
    %v1879 = vld [vmem:[%s3 + $0x308] sm:$0xff]
    %v1880 = vld [vmem:[%s3 + $0x310] sm:$0xff]
    %v1881 = vld [vmem:[%s3 + $0x318] sm:$0xff]
    %v1882 = vld [vmem:[%s3 + $0x320] sm:$0xff]
    %v1883 = vld [vmem:[%s3 + $0x328] sm:$0xff]
    %v1884 = vld [vmem:[%s3 + $0x330] sm:$0xff]
    %v1885 = vld [vmem:[%s3 + $0x338] sm:$0xff]
    %v1886 = vld [vmem:[%s3 + $0x340] sm:$0xff]
    %v1887 = vld [vmem:[%s3 + $0x348] sm:$0xff]
    %v1888 = vld [vmem:[%s3 + $0x350] sm:$0xff]
    %v1889 = vld [vmem:[%s3 + $0x358] sm:$0xff]
    %v1890 = vld [vmem:[%s3 + $0x360] sm:$0xff]
    %v1891 = vld [vmem:[%s3 + $0x368] sm:$0xff]
    %v1892 = vld [vmem:[%s3 + $0x370] sm:$0xff]
    %v1893 = vld [vmem:[%s3 + $0x378] sm:$0xff]
    %v1894 = vld [vmem:[%s3 + $0x380] sm:$0xff]
    %v1895 = vld [vmem:[%s3 + $0x388] sm:$0xff]
    %v1896 = vld [vmem:[%s3 + $0x390] sm:$0xff]
    %v1897 = vld [vmem:[%s3 + $0x398] sm:$0xff]
    %v1898 = vld [vmem:[%s3 + $0x3a0] sm:$0xff]
    %v1899 = vld [vmem:[%s3 + $0x3a8] sm:$0xff]
    %v1900 = vld [vmem:[%s3 + $0x3b0] sm:$0xff]
    %v1901 = vld [vmem:[%s3 + $0x3b8] sm:$0xff]
    %v1902 = vld [vmem:[%s3 + $0x3c0] sm:$0xff]
    %v1903 = vld [vmem:[%s3 + $0x3c8] sm:$0xff]
    %v1904 = vld [vmem:[%s3 + $0x3d0] sm:$0xff]
    %v1905 = vld [vmem:[%s3 + $0x3d8] sm:$0xff]
    %v1906 = vld [vmem:[%s3 + $0x3e0] sm:$0xff]
    %v1907 = vld [vmem:[%s3 + $0x3e8] sm:$0xff]
    %v1908 = vld [vmem:[%s3 + $0x3f0] sm:$0xff]
    %v1909 = vld [vmem:[%s3 + $0x3f8] sm:$0xff]
    %v1910 = vld [vmem:[%s4] sm:$0xf]
    %v1912 = vperm.slane %v1910, 0
    %v1913 = vperm.slane %v1910, 1
    %v1914 = vperm.slane %v1910, 2
    %v1915 = vperm.slane %v1910, 3
    %v2048 = vunpack.c.l.b16 %v1782
    %v2049 = vunpack.c.h.b16 %v1782
    %v2050 = vunpack.c.l.b16 %v1783
    %v2051 = vunpack.c.h.b16 %v1783
    %v2052 = vunpack.c.l.b16 %v1784
    %v2053 = vunpack.c.h.b16 %v1784
    %v2054 = vunpack.c.l.b16 %v1785
    %v2055 = vunpack.c.h.b16 %v1785
    %v2056 = vunpack.c.l.b16 %v1786
    %v2057 = vunpack.c.h.b16 %v1786
    %v2058 = vunpack.c.l.b16 %v1787
    %v2059 = vunpack.c.h.b16 %v1787
    %v2060 = vunpack.c.l.b16 %v1788
    %v2061 = vunpack.c.h.b16 %v1788
    %v2062 = vunpack.c.l.b16 %v1789
    %v2063 = vunpack.c.h.b16 %v1789
    %v2064 = vunpack.c.l.b16 %v1790
    %v2065 = vunpack.c.h.b16 %v1790
    %v2066 = vunpack.c.l.b16 %v1791
    %v2067 = vunpack.c.h.b16 %v1791
    %v2068 = vunpack.c.l.b16 %v1792
    %v2069 = vunpack.c.h.b16 %v1792
    %v2070 = vunpack.c.l.b16 %v1793
    %v2071 = vunpack.c.h.b16 %v1793
    %v2072 = vunpack.c.l.b16 %v1794
    %v2073 = vunpack.c.h.b16 %v1794
    %v2074 = vunpack.c.l.b16 %v1795
    %v2075 = vunpack.c.h.b16 %v1795
    %v2076 = vunpack.c.l.b16 %v1796
    %v2077 = vunpack.c.h.b16 %v1796
    %v2078 = vunpack.c.l.b16 %v1797
    %v2079 = vunpack.c.h.b16 %v1797
    %v2080 = vunpack.c.l.b16 %v1798
    %v2081 = vunpack.c.h.b16 %v1798
    %v2082 = vunpack.c.l.b16 %v1799
    %v2083 = vunpack.c.h.b16 %v1799
    %v2084 = vunpack.c.l.b16 %v1800
    %v2085 = vunpack.c.h.b16 %v1800
    %v2086 = vunpack.c.l.b16 %v1801
    %v2087 = vunpack.c.h.b16 %v1801
    %v2088 = vunpack.c.l.b16 %v1802
    %v2089 = vunpack.c.h.b16 %v1802
    %v2090 = vunpack.c.l.b16 %v1803
    %v2091 = vunpack.c.h.b16 %v1803
    %v2092 = vunpack.c.l.b16 %v1804
    %v2093 = vunpack.c.h.b16 %v1804
    %v2094 = vunpack.c.l.b16 %v1805
    %v2095 = vunpack.c.h.b16 %v1805
    %v2096 = vunpack.c.l.b16 %v1806
    %v2097 = vunpack.c.h.b16 %v1806
    %v2098 = vunpack.c.l.b16 %v1807
    %v2099 = vunpack.c.h.b16 %v1807
    %v2100 = vunpack.c.l.b16 %v1808
    %v2101 = vunpack.c.h.b16 %v1808
    %v2102 = vunpack.c.l.b16 %v1809
    %v2103 = vunpack.c.h.b16 %v1809
    %v2104 = vunpack.c.l.b16 %v1810
    %v2105 = vunpack.c.h.b16 %v1810
    %v2106 = vunpack.c.l.b16 %v1811
    %v2107 = vunpack.c.h.b16 %v1811
    %v2108 = vunpack.c.l.b16 %v1812
    %v2109 = vunpack.c.h.b16 %v1812
    %v2110 = vunpack.c.l.b16 %v1813
    %v2111 = vunpack.c.h.b16 %v1813
    %v2112 = vunpack.c.l.b16 %v1814
    %v2113 = vunpack.c.h.b16 %v1814
    %v2114 = vunpack.c.l.b16 %v1815
    %v2115 = vunpack.c.h.b16 %v1815
    %v2116 = vunpack.c.l.b16 %v1816
    %v2117 = vunpack.c.h.b16 %v1816
    %v2118 = vunpack.c.l.b16 %v1817
    %v2119 = vunpack.c.h.b16 %v1817
    %v2120 = vunpack.c.l.b16 %v1818
    %v2121 = vunpack.c.h.b16 %v1818
    %v2122 = vunpack.c.l.b16 %v1819
    %v2123 = vunpack.c.h.b16 %v1819
    %v2124 = vunpack.c.l.b16 %v1820
    %v2125 = vunpack.c.h.b16 %v1820
    %v2126 = vunpack.c.l.b16 %v1821
    %v2127 = vunpack.c.h.b16 %v1821
    %v2128 = vunpack.c.l.b16 %v1822
    %v2129 = vunpack.c.h.b16 %v1822
    %v2130 = vunpack.c.l.b16 %v1823
    %v2131 = vunpack.c.h.b16 %v1823
    %v2132 = vunpack.c.l.b16 %v1824
    %v2133 = vunpack.c.h.b16 %v1824
    %v2134 = vunpack.c.l.b16 %v1825
    %v2135 = vunpack.c.h.b16 %v1825
    %v2136 = vunpack.c.l.b16 %v1826
    %v2137 = vunpack.c.h.b16 %v1826
    %v2138 = vunpack.c.l.b16 %v1827
    %v2139 = vunpack.c.h.b16 %v1827
    %v2140 = vunpack.c.l.b16 %v1828
    %v2141 = vunpack.c.h.b16 %v1828
    %v2142 = vunpack.c.l.b16 %v1829
    %v2143 = vunpack.c.h.b16 %v1829
    %v2144 = vunpack.c.l.b16 %v1830
    %v2145 = vunpack.c.h.b16 %v1830
    %v2146 = vunpack.c.l.b16 %v1831
    %v2147 = vunpack.c.h.b16 %v1831
    %v2148 = vunpack.c.l.b16 %v1832
    %v2149 = vunpack.c.h.b16 %v1832
    %v2150 = vunpack.c.l.b16 %v1833
    %v2151 = vunpack.c.h.b16 %v1833
    %v2152 = vunpack.c.l.b16 %v1834
    %v2153 = vunpack.c.h.b16 %v1834
    %v2154 = vunpack.c.l.b16 %v1835
    %v2155 = vunpack.c.h.b16 %v1835
    %v2156 = vunpack.c.l.b16 %v1836
    %v2157 = vunpack.c.h.b16 %v1836
    %v2158 = vunpack.c.l.b16 %v1837
    %v2159 = vunpack.c.h.b16 %v1837
    %v2160 = vunpack.c.l.b16 %v1838
    %v2161 = vunpack.c.h.b16 %v1838
    %v2162 = vunpack.c.l.b16 %v1839
    %v2163 = vunpack.c.h.b16 %v1839
    %v2164 = vunpack.c.l.b16 %v1840
    %v2165 = vunpack.c.h.b16 %v1840
    %v2166 = vunpack.c.l.b16 %v1841
    %v2167 = vunpack.c.h.b16 %v1841
    %v2168 = vunpack.c.l.b16 %v1842
    %v2169 = vunpack.c.h.b16 %v1842
    %v2170 = vunpack.c.l.b16 %v1843
    %v2171 = vunpack.c.h.b16 %v1843
    %v2172 = vunpack.c.l.b16 %v1844
    %v2173 = vunpack.c.h.b16 %v1844
    %v2174 = vunpack.c.l.b16 %v1845
    %v2175 = vunpack.c.h.b16 %v1845
    %v2176 = vunpack.c.l.b16 %v1846
    %v2177 = vunpack.c.h.b16 %v1846
    %v2178 = vunpack.c.l.b16 %v1847
    %v2179 = vunpack.c.h.b16 %v1847
    %v2180 = vunpack.c.l.b16 %v1848
    %v2181 = vunpack.c.h.b16 %v1848
    %v2182 = vunpack.c.l.b16 %v1849
    %v2183 = vunpack.c.h.b16 %v1849
    %v2184 = vunpack.c.l.b16 %v1850
    %v2185 = vunpack.c.h.b16 %v1850
    %v2186 = vunpack.c.l.b16 %v1851
    %v2187 = vunpack.c.h.b16 %v1851
    %v2188 = vunpack.c.l.b16 %v1852
    %v2189 = vunpack.c.h.b16 %v1852
    %v2190 = vunpack.c.l.b16 %v1853
    %v2191 = vunpack.c.h.b16 %v1853
    %v2192 = vunpack.c.l.b16 %v1854
    %v2193 = vunpack.c.h.b16 %v1854
    %v2194 = vunpack.c.l.b16 %v1855
    %v2195 = vunpack.c.h.b16 %v1855
    %v2196 = vunpack.c.l.b16 %v1856
    %v2197 = vunpack.c.h.b16 %v1856
    %v2198 = vunpack.c.l.b16 %v1857
    %v2199 = vunpack.c.h.b16 %v1857
    %v2200 = vunpack.c.l.b16 %v1858
    %v2201 = vunpack.c.h.b16 %v1858
    %v2202 = vunpack.c.l.b16 %v1859
    %v2203 = vunpack.c.h.b16 %v1859
    %v2204 = vunpack.c.l.b16 %v1860
    %v2205 = vunpack.c.h.b16 %v1860
    %v2206 = vunpack.c.l.b16 %v1861
    %v2207 = vunpack.c.h.b16 %v1861
    %v2208 = vunpack.c.l.b16 %v1862
    %v2209 = vunpack.c.h.b16 %v1862
    %v2210 = vunpack.c.l.b16 %v1863
    %v2211 = vunpack.c.h.b16 %v1863
    %v2212 = vunpack.c.l.b16 %v1864
    %v2213 = vunpack.c.h.b16 %v1864
    %v2214 = vunpack.c.l.b16 %v1865
    %v2215 = vunpack.c.h.b16 %v1865
    %v2216 = vunpack.c.l.b16 %v1866
    %v2217 = vunpack.c.h.b16 %v1866
    %v2218 = vunpack.c.l.b16 %v1867
    %v2219 = vunpack.c.h.b16 %v1867
    %v2220 = vunpack.c.l.b16 %v1868
    %v2221 = vunpack.c.h.b16 %v1868
    %v2222 = vunpack.c.l.b16 %v1869
    %v2223 = vunpack.c.h.b16 %v1869
    %v2224 = vunpack.c.l.b16 %v1870
    %v2225 = vunpack.c.h.b16 %v1870
    %v2226 = vunpack.c.l.b16 %v1871
    %v2227 = vunpack.c.h.b16 %v1871
    %v2228 = vunpack.c.l.b16 %v1872
    %v2229 = vunpack.c.h.b16 %v1872
    %v2230 = vunpack.c.l.b16 %v1873
    %v2231 = vunpack.c.h.b16 %v1873
    %v2232 = vunpack.c.l.b16 %v1874
    %v2233 = vunpack.c.h.b16 %v1874
    %v2234 = vunpack.c.l.b16 %v1875
    %v2235 = vunpack.c.h.b16 %v1875
    %v2236 = vunpack.c.l.b16 %v1876
    %v2237 = vunpack.c.h.b16 %v1876
    %v2238 = vunpack.c.l.b16 %v1877
    %v2239 = vunpack.c.h.b16 %v1877
    %v2240 = vunpack.c.l.b16 %v1878
    %v2241 = vunpack.c.h.b16 %v1878
    %v2242 = vunpack.c.l.b16 %v1879
    %v2243 = vunpack.c.h.b16 %v1879
    %v2244 = vunpack.c.l.b16 %v1880
    %v2245 = vunpack.c.h.b16 %v1880
    %v2246 = vunpack.c.l.b16 %v1881
    %v2247 = vunpack.c.h.b16 %v1881
    %v2248 = vunpack.c.l.b16 %v1882
    %v2249 = vunpack.c.h.b16 %v1882
    %v2250 = vunpack.c.l.b16 %v1883
    %v2251 = vunpack.c.h.b16 %v1883
    %v2252 = vunpack.c.l.b16 %v1884
    %v2253 = vunpack.c.h.b16 %v1884
    %v2254 = vunpack.c.l.b16 %v1885
    %v2255 = vunpack.c.h.b16 %v1885
    %v2256 = vunpack.c.l.b16 %v1886
    %v2257 = vunpack.c.h.b16 %v1886
    %v2258 = vunpack.c.l.b16 %v1887
    %v2259 = vunpack.c.h.b16 %v1887
    %v2260 = vunpack.c.l.b16 %v1888
    %v2261 = vunpack.c.h.b16 %v1888
    %v2262 = vunpack.c.l.b16 %v1889
    %v2263 = vunpack.c.h.b16 %v1889
    %v2264 = vunpack.c.l.b16 %v1890
    %v2265 = vunpack.c.h.b16 %v1890
    %v2266 = vunpack.c.l.b16 %v1891
    %v2267 = vunpack.c.h.b16 %v1891
    %v2268 = vunpack.c.l.b16 %v1892
    %v2269 = vunpack.c.h.b16 %v1892
    %v2270 = vunpack.c.l.b16 %v1893
    %v2271 = vunpack.c.h.b16 %v1893
    %v2272 = vunpack.c.l.b16 %v1894
    %v2273 = vunpack.c.h.b16 %v1894
    %v2274 = vunpack.c.l.b16 %v1895
    %v2275 = vunpack.c.h.b16 %v1895
    %v2276 = vunpack.c.l.b16 %v1896
    %v2277 = vunpack.c.h.b16 %v1896
    %v2278 = vunpack.c.l.b16 %v1897
    %v2279 = vunpack.c.h.b16 %v1897
    %v2280 = vunpack.c.l.b16 %v1898
    %v2281 = vunpack.c.h.b16 %v1898
    %v2282 = vunpack.c.l.b16 %v1899
    %v2283 = vunpack.c.h.b16 %v1899
    %v2284 = vunpack.c.l.b16 %v1900
    %v2285 = vunpack.c.h.b16 %v1900
    %v2286 = vunpack.c.l.b16 %v1901
    %v2287 = vunpack.c.h.b16 %v1901
    %v2288 = vunpack.c.l.b16 %v1902
    %v2289 = vunpack.c.h.b16 %v1902
    %v2290 = vunpack.c.l.b16 %v1903
    %v2291 = vunpack.c.h.b16 %v1903
    %v2292 = vunpack.c.l.b16 %v1904
    %v2293 = vunpack.c.h.b16 %v1904
    %v2294 = vunpack.c.l.b16 %v1905
    %v2295 = vunpack.c.h.b16 %v1905
    %v2296 = vunpack.c.l.b16 %v1906
    %v2297 = vunpack.c.h.b16 %v1906
    %v2298 = vunpack.c.l.b16 %v1907
    %v2299 = vunpack.c.h.b16 %v1907
    %v2300 = vunpack.c.l.b16 %v1908
    %v2301 = vunpack.c.h.b16 %v1908
    %v2302 = vunpack.c.l.b16 %v1909
    %v2303 = vunpack.c.h.b16 %v1909
    %v2304 = vpack.c.b16 %v2052, %v2048
    %v2305 = vpack.c.b16 %v2053, %v2049
    %v2306 = vpack.c.b16 %v2054, %v2050
    %v2307 = vpack.c.b16 %v2055, %v2051
    %v2308 = vpack.c.b16 %v2060, %v2056
    %v2309 = vpack.c.b16 %v2061, %v2057
    %v2310 = vpack.c.b16 %v2062, %v2058
    %v2311 = vpack.c.b16 %v2063, %v2059
    %v2312 = vpack.c.b16 %v2068, %v2064
    %v2313 = vpack.c.b16 %v2069, %v2065
    %v2314 = vpack.c.b16 %v2070, %v2066
    %v2315 = vpack.c.b16 %v2071, %v2067
    %v2316 = vpack.c.b16 %v2076, %v2072
    %v2317 = vpack.c.b16 %v2077, %v2073
    %v2318 = vpack.c.b16 %v2078, %v2074
    %v2319 = vpack.c.b16 %v2079, %v2075
    %v2320 = vpack.c.b16 %v2084, %v2080
    %v2321 = vpack.c.b16 %v2085, %v2081
    %v2322 = vpack.c.b16 %v2086, %v2082
    %v2323 = vpack.c.b16 %v2087, %v2083
    %v2324 = vpack.c.b16 %v2092, %v2088
    %v2325 = vpack.c.b16 %v2093, %v2089
    %v2326 = vpack.c.b16 %v2094, %v2090
    %v2327 = vpack.c.b16 %v2095, %v2091
    %v2328 = vpack.c.b16 %v2100, %v2096
    %v2329 = vpack.c.b16 %v2101, %v2097
    %v2330 = vpack.c.b16 %v2102, %v2098
    %v2331 = vpack.c.b16 %v2103, %v2099
    %v2332 = vpack.c.b16 %v2108, %v2104
    %v2333 = vpack.c.b16 %v2109, %v2105
    %v2334 = vpack.c.b16 %v2110, %v2106
    %v2335 = vpack.c.b16 %v2111, %v2107
    %v2336 = vpack.c.b16 %v2116, %v2112
    %v2337 = vpack.c.b16 %v2117, %v2113
    %v2338 = vpack.c.b16 %v2118, %v2114
    %v2339 = vpack.c.b16 %v2119, %v2115
    %v2340 = vpack.c.b16 %v2124, %v2120
    %v2341 = vpack.c.b16 %v2125, %v2121
    %v2342 = vpack.c.b16 %v2126, %v2122
    %v2343 = vpack.c.b16 %v2127, %v2123
    %v2344 = vpack.c.b16 %v2132, %v2128
    %v2345 = vpack.c.b16 %v2133, %v2129
    %v2346 = vpack.c.b16 %v2134, %v2130
    %v2347 = vpack.c.b16 %v2135, %v2131
    %v2348 = vpack.c.b16 %v2140, %v2136
    %v2349 = vpack.c.b16 %v2141, %v2137
    %v2350 = vpack.c.b16 %v2142, %v2138
    %v2351 = vpack.c.b16 %v2143, %v2139
    %v2352 = vpack.c.b16 %v2148, %v2144
    %v2353 = vpack.c.b16 %v2149, %v2145
    %v2354 = vpack.c.b16 %v2150, %v2146
    %v2355 = vpack.c.b16 %v2151, %v2147
    %v2356 = vpack.c.b16 %v2156, %v2152
    %v2357 = vpack.c.b16 %v2157, %v2153
    %v2358 = vpack.c.b16 %v2158, %v2154
    %v2359 = vpack.c.b16 %v2159, %v2155
    %v2360 = vpack.c.b16 %v2164, %v2160
    %v2361 = vpack.c.b16 %v2165, %v2161
    %v2362 = vpack.c.b16 %v2166, %v2162
    %v2363 = vpack.c.b16 %v2167, %v2163
    %v2364 = vpack.c.b16 %v2172, %v2168
    %v2365 = vpack.c.b16 %v2173, %v2169
    %v2366 = vpack.c.b16 %v2174, %v2170
    %v2367 = vpack.c.b16 %v2175, %v2171
    %v2368 = vpack.c.b16 %v2180, %v2176
    %v2369 = vpack.c.b16 %v2181, %v2177
    %v2370 = vpack.c.b16 %v2182, %v2178
    %v2371 = vpack.c.b16 %v2183, %v2179
    %v2372 = vpack.c.b16 %v2188, %v2184
    %v2373 = vpack.c.b16 %v2189, %v2185
    %v2374 = vpack.c.b16 %v2190, %v2186
    %v2375 = vpack.c.b16 %v2191, %v2187
    %v2376 = vpack.c.b16 %v2196, %v2192
    %v2377 = vpack.c.b16 %v2197, %v2193
    %v2378 = vpack.c.b16 %v2198, %v2194
    %v2379 = vpack.c.b16 %v2199, %v2195
    %v2380 = vpack.c.b16 %v2204, %v2200
    %v2381 = vpack.c.b16 %v2205, %v2201
    %v2382 = vpack.c.b16 %v2206, %v2202
    %v2383 = vpack.c.b16 %v2207, %v2203
    %v2384 = vpack.c.b16 %v2212, %v2208
    %v2385 = vpack.c.b16 %v2213, %v2209
    %v2386 = vpack.c.b16 %v2214, %v2210
    %v2387 = vpack.c.b16 %v2215, %v2211
    %v2388 = vpack.c.b16 %v2220, %v2216
    %v2389 = vpack.c.b16 %v2221, %v2217
    %v2390 = vpack.c.b16 %v2222, %v2218
    %v2391 = vpack.c.b16 %v2223, %v2219
    %v2392 = vpack.c.b16 %v2228, %v2224
    %v2393 = vpack.c.b16 %v2229, %v2225
    %v2394 = vpack.c.b16 %v2230, %v2226
    %v2395 = vpack.c.b16 %v2231, %v2227
    %v2396 = vpack.c.b16 %v2236, %v2232
    %v2397 = vpack.c.b16 %v2237, %v2233
    %v2398 = vpack.c.b16 %v2238, %v2234
    %v2399 = vpack.c.b16 %v2239, %v2235
    %v2400 = vpack.c.b16 %v2244, %v2240
    %v2401 = vpack.c.b16 %v2245, %v2241
    %v2402 = vpack.c.b16 %v2246, %v2242
    %v2403 = vpack.c.b16 %v2247, %v2243
    %v2404 = vpack.c.b16 %v2252, %v2248
    %v2405 = vpack.c.b16 %v2253, %v2249
    %v2406 = vpack.c.b16 %v2254, %v2250
    %v2407 = vpack.c.b16 %v2255, %v2251
    %v2408 = vpack.c.b16 %v2260, %v2256
    %v2409 = vpack.c.b16 %v2261, %v2257
    %v2410 = vpack.c.b16 %v2262, %v2258
    %v2411 = vpack.c.b16 %v2263, %v2259
    %v2412 = vpack.c.b16 %v2268, %v2264
    %v2413 = vpack.c.b16 %v2269, %v2265
    %v2414 = vpack.c.b16 %v2270, %v2266
    %v2415 = vpack.c.b16 %v2271, %v2267
    %v2416 = vpack.c.b16 %v2276, %v2272
    %v2417 = vpack.c.b16 %v2277, %v2273
    %v2418 = vpack.c.b16 %v2278, %v2274
    %v2419 = vpack.c.b16 %v2279, %v2275
    %v2420 = vpack.c.b16 %v2284, %v2280
    %v2421 = vpack.c.b16 %v2285, %v2281
    %v2422 = vpack.c.b16 %v2286, %v2282
    %v2423 = vpack.c.b16 %v2287, %v2283
    %v2424 = vpack.c.b16 %v2292, %v2288
    %v2425 = vpack.c.b16 %v2293, %v2289
    %v2426 = vpack.c.b16 %v2294, %v2290
    %v2427 = vpack.c.b16 %v2295, %v2291
    %v2428 = vpack.c.b16 %v2300, %v2296
    %v2429 = vpack.c.b16 %v2301, %v2297
    %v2430 = vpack.c.b16 %v2302, %v2298
    %v2431 = vpack.c.b16 %v2303, %v2299
    %2560 = vmatpush.bf16.msra.mxu0 %v2332
    %2561 = vmatpush.bf16.msra.mxu0 %v2328
    %2562 = vmatpush.bf16.msra.mxu0 %v2324
    %2563 = vmatpush.bf16.msra.mxu0 %v2320
    %2564 = vmatpush.bf16.msra.mxu0 %v2316
    %2565 = vmatpush.bf16.msra.mxu0 %v2312
    %2566 = vmatpush.bf16.msra.mxu0 %v2308
    %2567 = vmatpush.bf16.msra.mxu0 %v2304
    %2568 = vmatmul.bf16.gmra.mxu0 %v1778
    %v2569 = vpop.f32.mrf.mxu0
    %v2570 = vadd.f32 %v1912, %v2569
    %v2571 = vpop.f32.mrf.mxu0
    %2572 = vdwg.mxu0
    %2573 = vmatpush.bf16.msra.mxu0 %v2364
    %2574 = vmatpush.bf16.msra.mxu0 %v2360
    %2575 = vmatpush.bf16.msra.mxu0 %v2356
    %2576 = vmatpush.bf16.msra.mxu0 %v2352
    %2577 = vmatpush.bf16.msra.mxu0 %v2348
    %2578 = vmatpush.bf16.msra.mxu0 %v2344
    %2579 = vmatpush.bf16.msra.mxu0 %v2340
    %2580 = vmatpush.bf16.msra.mxu0 %v2336
    %2581 = vmatmul.bf16.gmra.mxu0 %v1779
    %v2582 = vpop.f32.mrf.mxu0
    %v2583 = vadd.f32 %v2570, %v2582
    %v2584 = vpop.f32.mrf.mxu0
    %2585 = vdwg.mxu0
    %2586 = vmatpush.bf16.msra.mxu0 %v2396
    %2587 = vmatpush.bf16.msra.mxu0 %v2392
    %2588 = vmatpush.bf16.msra.mxu0 %v2388
    %2589 = vmatpush.bf16.msra.mxu0 %v2384
    %2590 = vmatpush.bf16.msra.mxu0 %v2380
    %2591 = vmatpush.bf16.msra.mxu0 %v2376
    %2592 = vmatpush.bf16.msra.mxu0 %v2372
    %2593 = vmatpush.bf16.msra.mxu0 %v2368
    %2594 = vmatmul.bf16.gmra.mxu0 %v1780
    %v2595 = vpop.f32.mrf.mxu0
    %v2596 = vadd.f32 %v2583, %v2595
    %v2597 = vpop.f32.mrf.mxu0
    %2598 = vdwg.mxu0
    %2599 = vmatpush.bf16.msra.mxu0 %v2428
    %2600 = vmatpush.bf16.msra.mxu0 %v2424
    %2601 = vmatpush.bf16.msra.mxu0 %v2420
    %2602 = vmatpush.bf16.msra.mxu0 %v2416
    %2603 = vmatpush.bf16.msra.mxu0 %v2412
    %2604 = vmatpush.bf16.msra.mxu0 %v2408
    %2605 = vmatpush.bf16.msra.mxu0 %v2404
    %2606 = vmatpush.bf16.msra.mxu0 %v2400
    %2607 = vmatmul.bf16.gmra.mxu0 %v1781
    %v2608 = vpop.f32.mrf.mxu0
    %v2609 = vadd.f32 %v2596, %v2608
    %v2610 = vpop.f32.mrf.mxu0
    %2611 = vdwg.mxu0
    %2612 = vmatpush.bf16.msra.mxu0 %v2333
    %2613 = vmatpush.bf16.msra.mxu0 %v2329
    %2614 = vmatpush.bf16.msra.mxu0 %v2325
    %2615 = vmatpush.bf16.msra.mxu0 %v2321
    %2616 = vmatpush.bf16.msra.mxu0 %v2317
    %2617 = vmatpush.bf16.msra.mxu0 %v2313
    %2618 = vmatpush.bf16.msra.mxu0 %v2309
    %2619 = vmatpush.bf16.msra.mxu0 %v2305
    %2620 = vmatmul.bf16.gmra.mxu0 %v1778
    %v2621 = vpop.f32.mrf.mxu0
    %v2622 = vadd.f32 %v1913, %v2621
    %v2623 = vpop.f32.mrf.mxu0
    %2624 = vdwg.mxu0
    %2625 = vmatpush.bf16.msra.mxu0 %v2365
    %2626 = vmatpush.bf16.msra.mxu0 %v2361
    %2627 = vmatpush.bf16.msra.mxu0 %v2357
    %2628 = vmatpush.bf16.msra.mxu0 %v2353
    %2629 = vmatpush.bf16.msra.mxu0 %v2349
    %2630 = vmatpush.bf16.msra.mxu0 %v2345
    %2631 = vmatpush.bf16.msra.mxu0 %v2341
    %2632 = vmatpush.bf16.msra.mxu0 %v2337
    %2633 = vmatmul.bf16.gmra.mxu0 %v1779
    %v2634 = vpop.f32.mrf.mxu0
    %v2635 = vadd.f32 %v2622, %v2634
    %v2636 = vpop.f32.mrf.mxu0
    %2637 = vdwg.mxu0
    %2638 = vmatpush.bf16.msra.mxu0 %v2397
    %2639 = vmatpush.bf16.msra.mxu0 %v2393
    %2640 = vmatpush.bf16.msra.mxu0 %v2389
    %2641 = vmatpush.bf16.msra.mxu0 %v2385
    %2642 = vmatpush.bf16.msra.mxu0 %v2381
    %2643 = vmatpush.bf16.msra.mxu0 %v2377
    %2644 = vmatpush.bf16.msra.mxu0 %v2373
    %2645 = vmatpush.bf16.msra.mxu0 %v2369
    %2646 = vmatmul.bf16.gmra.mxu0 %v1780
    %v2647 = vpop.f32.mrf.mxu0
    %v2648 = vadd.f32 %v2635, %v2647
    %v2649 = vpop.f32.mrf.mxu0
    %2650 = vdwg.mxu0
    %2651 = vmatpush.bf16.msra.mxu0 %v2429
    %2652 = vmatpush.bf16.msra.mxu0 %v2425
    %2653 = vmatpush.bf16.msra.mxu0 %v2421
    %2654 = vmatpush.bf16.msra.mxu0 %v2417
    %2655 = vmatpush.bf16.msra.mxu0 %v2413
    %2656 = vmatpush.bf16.msra.mxu0 %v2409
    %2657 = vmatpush.bf16.msra.mxu0 %v2405
    %2658 = vmatpush.bf16.msra.mxu0 %v2401
    %2659 = vmatmul.bf16.gmra.mxu0 %v1781
    %v2660 = vpop.f32.mrf.mxu0
    %v2661 = vadd.f32 %v2648, %v2660
    %v2662 = vpop.f32.mrf.mxu0
    %2663 = vdwg.mxu0
    %2664 = vmatpush.bf16.msra.mxu0 %v2334
    %2665 = vmatpush.bf16.msra.mxu0 %v2330
    %2666 = vmatpush.bf16.msra.mxu0 %v2326
    %2667 = vmatpush.bf16.msra.mxu0 %v2322
    %2668 = vmatpush.bf16.msra.mxu0 %v2318
    %2669 = vmatpush.bf16.msra.mxu0 %v2314
    %2670 = vmatpush.bf16.msra.mxu0 %v2310
    %2671 = vmatpush.bf16.msra.mxu0 %v2306
    %2672 = vmatmul.bf16.gmra.mxu0 %v1778
    %v2673 = vpop.f32.mrf.mxu0
    %v2674 = vadd.f32 %v1914, %v2673
    %v2675 = vpop.f32.mrf.mxu0
    %2676 = vdwg.mxu0
    %2677 = vmatpush.bf16.msra.mxu0 %v2366
    %2678 = vmatpush.bf16.msra.mxu0 %v2362
    %2679 = vmatpush.bf16.msra.mxu0 %v2358
    %2680 = vmatpush.bf16.msra.mxu0 %v2354
    %2681 = vmatpush.bf16.msra.mxu0 %v2350
    %2682 = vmatpush.bf16.msra.mxu0 %v2346
    %2683 = vmatpush.bf16.msra.mxu0 %v2342
    %2684 = vmatpush.bf16.msra.mxu0 %v2338
    %2685 = vmatmul.bf16.gmra.mxu0 %v1779
    %v2686 = vpop.f32.mrf.mxu0
    %v2687 = vadd.f32 %v2674, %v2686
    %v2688 = vpop.f32.mrf.mxu0
    %2689 = vdwg.mxu0
    %2690 = vmatpush.bf16.msra.mxu0 %v2398
    %2691 = vmatpush.bf16.msra.mxu0 %v2394
    %2692 = vmatpush.bf16.msra.mxu0 %v2390
    %2693 = vmatpush.bf16.msra.mxu0 %v2386
    %2694 = vmatpush.bf16.msra.mxu0 %v2382
    %2695 = vmatpush.bf16.msra.mxu0 %v2378
    %2696 = vmatpush.bf16.msra.mxu0 %v2374
    %2697 = vmatpush.bf16.msra.mxu0 %v2370
    %2698 = vmatmul.bf16.gmra.mxu0 %v1780
    %v2699 = vpop.f32.mrf.mxu0
    %v2700 = vadd.f32 %v2687, %v2699
    %v2701 = vpop.f32.mrf.mxu0
    %2702 = vdwg.mxu0
    %2703 = vmatpush.bf16.msra.mxu0 %v2430
    %2704 = vmatpush.bf16.msra.mxu0 %v2426
    %2705 = vmatpush.bf16.msra.mxu0 %v2422
    %2706 = vmatpush.bf16.msra.mxu0 %v2418
    %2707 = vmatpush.bf16.msra.mxu0 %v2414
    %2708 = vmatpush.bf16.msra.mxu0 %v2410
    %2709 = vmatpush.bf16.msra.mxu0 %v2406
    %2710 = vmatpush.bf16.msra.mxu0 %v2402
    %2711 = vmatmul.bf16.gmra.mxu0 %v1781
    %v2712 = vpop.f32.mrf.mxu0
    %v2713 = vadd.f32 %v2700, %v2712
    %v2714 = vpop.f32.mrf.mxu0
    %2715 = vdwg.mxu0
    %2716 = vmatpush.bf16.msra.mxu0 %v2335
    %2717 = vmatpush.bf16.msra.mxu0 %v2331
    %2718 = vmatpush.bf16.msra.mxu0 %v2327
    %2719 = vmatpush.bf16.msra.mxu0 %v2323
    %2720 = vmatpush.bf16.msra.mxu0 %v2319
    %2721 = vmatpush.bf16.msra.mxu0 %v2315
    %2722 = vmatpush.bf16.msra.mxu0 %v2311
    %2723 = vmatpush.bf16.msra.mxu0 %v2307
    %2724 = vmatmul.bf16.gmra.mxu0 %v1778
    %v2725 = vpop.f32.mrf.mxu0
    %v2726 = vadd.f32 %v1915, %v2725
    %v2727 = vpop.f32.mrf.mxu0
    %2728 = vdwg.mxu0
    %2729 = vmatpush.bf16.msra.mxu0 %v2367
    %2730 = vmatpush.bf16.msra.mxu0 %v2363
    %2731 = vmatpush.bf16.msra.mxu0 %v2359
    %2732 = vmatpush.bf16.msra.mxu0 %v2355
    %2733 = vmatpush.bf16.msra.mxu0 %v2351
    %2734 = vmatpush.bf16.msra.mxu0 %v2347
    %2735 = vmatpush.bf16.msra.mxu0 %v2343
    %2736 = vmatpush.bf16.msra.mxu0 %v2339
    %2737 = vmatmul.bf16.gmra.mxu0 %v1779
    %v2738 = vpop.f32.mrf.mxu0
    %v2739 = vadd.f32 %v2726, %v2738
    %v2740 = vpop.f32.mrf.mxu0
    %2741 = vdwg.mxu0
    %2742 = vmatpush.bf16.msra.mxu0 %v2399
    %2743 = vmatpush.bf16.msra.mxu0 %v2395
    %2744 = vmatpush.bf16.msra.mxu0 %v2391
    %2745 = vmatpush.bf16.msra.mxu0 %v2387
    %2746 = vmatpush.bf16.msra.mxu0 %v2383
    %2747 = vmatpush.bf16.msra.mxu0 %v2379
    %2748 = vmatpush.bf16.msra.mxu0 %v2375
    %2749 = vmatpush.bf16.msra.mxu0 %v2371
    %2750 = vmatmul.bf16.gmra.mxu0 %v1780
    %v2751 = vpop.f32.mrf.mxu0
    %v2752 = vadd.f32 %v2739, %v2751
    %v2753 = vpop.f32.mrf.mxu0
    %2754 = vdwg.mxu0
    %2755 = vmatpush.bf16.msra.mxu0 %v2431
    %2756 = vmatpush.bf16.msra.mxu0 %v2427
    %2757 = vmatpush.bf16.msra.mxu0 %v2423
    %2758 = vmatpush.bf16.msra.mxu0 %v2419
    %2759 = vmatpush.bf16.msra.mxu0 %v2415
    %2760 = vmatpush.bf16.msra.mxu0 %v2411
    %2761 = vmatpush.bf16.msra.mxu0 %v2407
    %2762 = vmatpush.bf16.msra.mxu0 %v2403
    %2763 = vmatmul.bf16.gmra.mxu0 %v1781
    %v2764 = vpop.f32.mrf.mxu0
    %v2765 = vadd.f32 %v2752, %v2764
    %v2766 = vpop.f32.mrf.mxu0
    %2767 = vdwg.mxu0
    %v2768 = vmax.f32 %v2609, 0.0
    %v2769 = vmax.f32 %v2661, 0.0
    %v2770 = vmax.f32 %v2713, 0.0
    %v2771 = vmax.f32 %v2765, 0.0
    %v2772 = vpack.c.bf16 %v2768, %v2768
    %v2773 = vpack.c.bf16 %v2769, %v2769
    %v2774 = vpack.c.bf16 %v2770, %v2770
    %v2775 = vpack.c.bf16 %v2771, %v2771
    %v2776 = vld [vmem:[%s5] sm:$0xf]
    %v2777 = vld [vmem:[%s5 + $0x4] sm:$0xf]
    %v2778 = vld [vmem:[%s5 + $0x8] sm:$0xf]
    %v2779 = vld [vmem:[%s5 + $0xc] sm:$0xf]
    %v2780 = vld [vmem:[%s5 + $0x10] sm:$0xf]
    %v2781 = vld [vmem:[%s5 + $0x14] sm:$0xf]
    %v2782 = vld [vmem:[%s5 + $0x18] sm:$0xf]
    %v2783 = vld [vmem:[%s5 + $0x1c] sm:$0xf]
    %v2784 = vld [vmem:[%s5 + $0x20] sm:$0xf]
    %v2785 = vld [vmem:[%s5 + $0x24] sm:$0xf]
    %v2786 = vld [vmem:[%s5 + $0x28] sm:$0xf]
    %v2787 = vld [vmem:[%s5 + $0x2c] sm:$0xf]
    %v2788 = vld [vmem:[%s5 + $0x30] sm:$0xf]
    %v2789 = vld [vmem:[%s5 + $0x34] sm:$0xf]
    %v2790 = vld [vmem:[%s5 + $0x38] sm:$0xf]
    %v2791 = vld [vmem:[%s5 + $0x3c] sm:$0xf]
    %v2792 = vld [vmem:[%s5 + $0x40] sm:$0xf]
    %v2793 = vld [vmem:[%s5 + $0x44] sm:$0xf]
    %v2794 = vld [vmem:[%s5 + $0x48] sm:$0xf]
    %v2795 = vld [vmem:[%s5 + $0x4c] sm:$0xf]
    %v2796 = vld [vmem:[%s5 + $0x50] sm:$0xf]
    %v2797 = vld [vmem:[%s5 + $0x54] sm:$0xf]
    %v2798 = vld [vmem:[%s5 + $0x58] sm:$0xf]
    %v2799 = vld [vmem:[%s5 + $0x5c] sm:$0xf]
    %v2800 = vld [vmem:[%s5 + $0x60] sm:$0xf]
    %v2801 = vld [vmem:[%s5 + $0x64] sm:$0xf]
    %v2802 = vld [vmem:[%s5 + $0x68] sm:$0xf]
    %v2803 = vld [vmem:[%s5 + $0x6c] sm:$0xf]
    %v2804 = vld [vmem:[%s5 + $0x70] sm:$0xf]
    %v2805 = vld [vmem:[%s5 + $0x74] sm:$0xf]
    %v2806 = vld [vmem:[%s5 + $0x78] sm:$0xf]
    %v2807 = vld [vmem:[%s5 + $0x7c] sm:$0xf]
    %v2808 = vld [vmem:[%s5 + $0x80] sm:$0xf]
    %v2809 = vld [vmem:[%s5 + $0x84] sm:$0xf]
    %v2810 = vld [vmem:[%s5 + $0x88] sm:$0xf]
    %v2811 = vld [vmem:[%s5 + $0x8c] sm:$0xf]
    %v2812 = vld [vmem:[%s5 + $0x90] sm:$0xf]
    %v2813 = vld [vmem:[%s5 + $0x94] sm:$0xf]
    %v2814 = vld [vmem:[%s5 + $0x98] sm:$0xf]
    %v2815 = vld [vmem:[%s5 + $0x9c] sm:$0xf]
    %v2816 = vld [vmem:[%s5 + $0xa0] sm:$0xf]
    %v2817 = vld [vmem:[%s5 + $0xa4] sm:$0xf]
    %v2818 = vld [vmem:[%s5 + $0xa8] sm:$0xf]
    %v2819 = vld [vmem:[%s5 + $0xac] sm:$0xf]
    %v2820 = vld [vmem:[%s5 + $0xb0] sm:$0xf]
    %v2821 = vld [vmem:[%s5 + $0xb4] sm:$0xf]
    %v2822 = vld [vmem:[%s5 + $0xb8] sm:$0xf]
    %v2823 = vld [vmem:[%s5 + $0xbc] sm:$0xf]
    %v2824 = vld [vmem:[%s5 + $0xc0] sm:$0xf]
    %v2825 = vld [vmem:[%s5 + $0xc4] sm:$0xf]
    %v2826 = vld [vmem:[%s5 + $0xc8] sm:$0xf]
    %v2827 = vld [vmem:[%s5 + $0xcc] sm:$0xf]
    %v2828 = vld [vmem:[%s5 + $0xd0] sm:$0xf]
    %v2829 = vld [vmem:[%s5 + $0xd4] sm:$0xf]
    %v2830 = vld [vmem:[%s5 + $0xd8] sm:$0xf]
    %v2831 = vld [vmem:[%s5 + $0xdc] sm:$0xf]
    %v2832 = vld [vmem:[%s5 + $0xe0] sm:$0xf]
    %v2833 = vld [vmem:[%s5 + $0xe4] sm:$0xf]
    %v2834 = vld [vmem:[%s5 + $0xe8] sm:$0xf]
    %v2835 = vld [vmem:[%s5 + $0xec] sm:$0xf]
    %v2836 = vld [vmem:[%s5 + $0xf0] sm:$0xf]
    %v2837 = vld [vmem:[%s5 + $0xf4] sm:$0xf]
    %v2838 = vld [vmem:[%s5 + $0xf8] sm:$0xf]
    %v2839 = vld [vmem:[%s5 + $0xfc] sm:$0xf]
    %v2840 = vld [vmem:[%s6] sm:$0x1]
    %v2842 = vperm.slane %v2840, 0
    %v2908 = vunpack.c.l.b16 %v2776
    %v2909 = vunpack.c.l.b16 %v2777
    %v2910 = vunpack.c.l.b16 %v2778
    %v2911 = vunpack.c.l.b16 %v2779
    %v2912 = vunpack.c.l.b16 %v2780
    %v2913 = vunpack.c.l.b16 %v2781
    %v2914 = vunpack.c.l.b16 %v2782
    %v2915 = vunpack.c.l.b16 %v2783
    %v2916 = vunpack.c.l.b16 %v2784
    %v2917 = vunpack.c.l.b16 %v2785
    %v2918 = vunpack.c.l.b16 %v2786
    %v2919 = vunpack.c.l.b16 %v2787
    %v2920 = vunpack.c.l.b16 %v2788
    %v2921 = vunpack.c.l.b16 %v2789
    %v2922 = vunpack.c.l.b16 %v2790
    %v2923 = vunpack.c.l.b16 %v2791
    %v2924 = vunpack.c.l.b16 %v2792
    %v2925 = vunpack.c.l.b16 %v2793
    %v2926 = vunpack.c.l.b16 %v2794
    %v2927 = vunpack.c.l.b16 %v2795
    %v2928 = vunpack.c.l.b16 %v2796
    %v2929 = vunpack.c.l.b16 %v2797
    %v2930 = vunpack.c.l.b16 %v2798
    %v2931 = vunpack.c.l.b16 %v2799
    %v2932 = vunpack.c.l.b16 %v2800
    %v2933 = vunpack.c.l.b16 %v2801
    %v2934 = vunpack.c.l.b16 %v2802
    %v2935 = vunpack.c.l.b16 %v2803
    %v2936 = vunpack.c.l.b16 %v2804
    %v2937 = vunpack.c.l.b16 %v2805
    %v2938 = vunpack.c.l.b16 %v2806
    %v2939 = vunpack.c.l.b16 %v2807
    %v2940 = vunpack.c.l.b16 %v2808
    %v2941 = vunpack.c.l.b16 %v2809
    %v2942 = vunpack.c.l.b16 %v2810
    %v2943 = vunpack.c.l.b16 %v2811
    %v2944 = vunpack.c.l.b16 %v2812
    %v2945 = vunpack.c.l.b16 %v2813
    %v2946 = vunpack.c.l.b16 %v2814
    %v2947 = vunpack.c.l.b16 %v2815
    %v2948 = vunpack.c.l.b16 %v2816
    %v2949 = vunpack.c.l.b16 %v2817
    %v2950 = vunpack.c.l.b16 %v2818
    %v2951 = vunpack.c.l.b16 %v2819
    %v2952 = vunpack.c.l.b16 %v2820
    %v2953 = vunpack.c.l.b16 %v2821
    %v2954 = vunpack.c.l.b16 %v2822
    %v2955 = vunpack.c.l.b16 %v2823
    %v2956 = vunpack.c.l.b16 %v2824
    %v2957 = vunpack.c.l.b16 %v2825
    %v2958 = vunpack.c.l.b16 %v2826
    %v2959 = vunpack.c.l.b16 %v2827
    %v2960 = vunpack.c.l.b16 %v2828
    %v2961 = vunpack.c.l.b16 %v2829
    %v2962 = vunpack.c.l.b16 %v2830
    %v2963 = vunpack.c.l.b16 %v2831
    %v2964 = vunpack.c.l.b16 %v2832
    %v2965 = vunpack.c.l.b16 %v2833
    %v2966 = vunpack.c.l.b16 %v2834
    %v2967 = vunpack.c.l.b16 %v2835
    %v2968 = vunpack.c.l.b16 %v2836
    %v2969 = vunpack.c.l.b16 %v2837
    %v2970 = vunpack.c.l.b16 %v2838
    %v2971 = vunpack.c.l.b16 %v2839
    %v2972 = vpack.c.b16 %v2909, %v2908
    %v2973 = vpack.c.b16 %v2911, %v2910
    %v2974 = vpack.c.b16 %v2913, %v2912
    %v2975 = vpack.c.b16 %v2915, %v2914
    %v2976 = vpack.c.b16 %v2917, %v2916
    %v2977 = vpack.c.b16 %v2919, %v2918
    %v2978 = vpack.c.b16 %v2921, %v2920
    %v2979 = vpack.c.b16 %v2923, %v2922
    %v2980 = vpack.c.b16 %v2925, %v2924
    %v2981 = vpack.c.b16 %v2927, %v2926
    %v2982 = vpack.c.b16 %v2929, %v2928
    %v2983 = vpack.c.b16 %v2931, %v2930
    %v2984 = vpack.c.b16 %v2933, %v2932
    %v2985 = vpack.c.b16 %v2935, %v2934
    %v2986 = vpack.c.b16 %v2937, %v2936
    %v2987 = vpack.c.b16 %v2939, %v2938
    %v2988 = vpack.c.b16 %v2941, %v2940
    %v2989 = vpack.c.b16 %v2943, %v2942
    %v2990 = vpack.c.b16 %v2945, %v2944
    %v2991 = vpack.c.b16 %v2947, %v2946
    %v2992 = vpack.c.b16 %v2949, %v2948
    %v2993 = vpack.c.b16 %v2951, %v2950
    %v2994 = vpack.c.b16 %v2953, %v2952
    %v2995 = vpack.c.b16 %v2955, %v2954
    %v2996 = vpack.c.b16 %v2957, %v2956
    %v2997 = vpack.c.b16 %v2959, %v2958
    %v2998 = vpack.c.b16 %v2961, %v2960
    %v2999 = vpack.c.b16 %v2963, %v2962
    %v3000 = vpack.c.b16 %v2965, %v2964
    %v3001 = vpack.c.b16 %v2967, %v2966
    %v3002 = vpack.c.b16 %v2969, %v2968
    %v3003 = vpack.c.b16 %v2971, %v2970
    %3036 = vmatpush.bf16.msra.mxu0 %v2979
    %3037 = vmatpush.bf16.msra.mxu0 %v2978
    %3038 = vmatpush.bf16.msra.mxu0 %v2977
    %3039 = vmatpush.bf16.msra.mxu0 %v2976
    %3040 = vmatpush.bf16.msra.mxu0 %v2975
    %3041 = vmatpush.bf16.msra.mxu0 %v2974
    %3042 = vmatpush.bf16.msra.mxu0 %v2973
    %3043 = vmatpush.bf16.msra.mxu0 %v2972
    %3044 = vmatmul.bf16.gmra.mxu0 %v2772
    %v3045 = vpop.f32.mrf.mxu0
    %v3046 = vadd.f32 %v2842, %v3045
    %v3047 = vpop.f32.mrf.mxu0
    %3048 = vdwg.mxu0
    %3049 = vmatpush.bf16.msra.mxu0 %v2987
    %3050 = vmatpush.bf16.msra.mxu0 %v2986
    %3051 = vmatpush.bf16.msra.mxu0 %v2985
    %3052 = vmatpush.bf16.msra.mxu0 %v2984
    %3053 = vmatpush.bf16.msra.mxu0 %v2983
    %3054 = vmatpush.bf16.msra.mxu0 %v2982
    %3055 = vmatpush.bf16.msra.mxu0 %v2981
    %3056 = vmatpush.bf16.msra.mxu0 %v2980
    %3057 = vmatmul.bf16.gmra.mxu0 %v2773
    %v3058 = vpop.f32.mrf.mxu0
    %v3059 = vadd.f32 %v3046, %v3058
    %v3060 = vpop.f32.mrf.mxu0
    %3061 = vdwg.mxu0
    %3062 = vmatpush.bf16.msra.mxu0 %v2995
    %3063 = vmatpush.bf16.msra.mxu0 %v2994
    %3064 = vmatpush.bf16.msra.mxu0 %v2993
    %3065 = vmatpush.bf16.msra.mxu0 %v2992
    %3066 = vmatpush.bf16.msra.mxu0 %v2991
    %3067 = vmatpush.bf16.msra.mxu0 %v2990
    %3068 = vmatpush.bf16.msra.mxu0 %v2989
    %3069 = vmatpush.bf16.msra.mxu0 %v2988
    %3070 = vmatmul.bf16.gmra.mxu0 %v2774
    %v3071 = vpop.f32.mrf.mxu0
    %v3072 = vadd.f32 %v3059, %v3071
    %v3073 = vpop.f32.mrf.mxu0
    %3074 = vdwg.mxu0
    %3075 = vmatpush.bf16.msra.mxu0 %v3003
    %3076 = vmatpush.bf16.msra.mxu0 %v3002
    %3077 = vmatpush.bf16.msra.mxu0 %v3001
    %3078 = vmatpush.bf16.msra.mxu0 %v3000
    %3079 = vmatpush.bf16.msra.mxu0 %v2999
    %3080 = vmatpush.bf16.msra.mxu0 %v2998
    %3081 = vmatpush.bf16.msra.mxu0 %v2997
    %3082 = vmatpush.bf16.msra.mxu0 %v2996
    %3083 = vmatmul.bf16.gmra.mxu0 %v2775
    %v3084 = vpop.f32.mrf.mxu0
    %v3085 = vadd.f32 %v3072, %v3084
    %v3086 = vpop.f32.mrf.mxu0
    %3087 = vdwg.mxu0
    %3088 = vst [vmem:[#allocation2] sm:$0xff] %v3085
    // Predicated region
    $region30: #{neural_network_forward.1} parent=1 // pred_check
      _
    $region31: #{neural_network_forward.1} parent=1 // pred_check_branch
      %3090 = sbr.rel (0) target = $region33
    $region32: #{neural_network_forward.1} parent=1 // pred_region
      %3092 = vsyncadd [#allocation3], 0
      %s3094 = sshll.u32 [#allocation2], 4
      %s3095 = int_to_ptr.vmem [resolvable:$true] %s3094
      %s3096 = sshll.u32 %s7, 4
      %s3097 = int_to_ptr.hbm [resolvable:$true] %s3096
      %3099 = dma.vmem_to_hbm [thread:$0]  %s3095, 128, %s3097, [#allocation3]
    $region33: #{neural_network_forward.1} parent=1 // pred_fallthru
      _
    // Predicated region
    $region34: #{neural_network_forward.1} parent=1 // pred_check
      _
    $region35: #{neural_network_forward.1} parent=1 // pred_check_branch
      %3101 = sbr.rel (0) target = $region37
    $region36: #{neural_network_forward.1} parent=1 // pred_region
      %3103 = dma.done [#allocation3], 128
    $region37: #{neural_network_forward.1} parent=1 // pred_fallthru
      _
    %3104 = vsyncpa [#allocation3], 1

</llo_original>
